<compile_context>
chip_gen: v7x
topology: tpu7x:2x2x1
jax: 0.10.0
libtpu: 0.0.40
codegen_flags: <defaults>
</compile_context>

<pallas_src>
import math

import jax
import jax.numpy as jnp
from jax import lax
from jax.experimental import pallas as pl
from jax.experimental.pallas import tpu as pltpu

# ----------------------------- model dims (small) -----------------------------
B = 2          # batch
N = 8          # sequence length
D_MODEL = 32   # d_model
H = 4          # heads
D_K = 8        # per-head key dim
D_V = 8        # per-head value dim
D_FF = 64      # feed-forward hidden dim
LN_EPS = 1e-5  # PyTorch nn.LayerNorm default

D_QK = H * D_K          # 32  q/k projection width
D_VV = H * D_V          # 32  v projection width

# ---- packed weight buffer layout: one (W_ROWS, 128) f32 slab, one DMA ----
# All weights live at lane offset 0 (no lane-offset slices inside the kernel).
R_WQ = 0                      # rows   0.. 32 : wq * 1/sqrt(d_k)   (D_MODEL, D_QK)
R_WK = R_WQ + D_MODEL         # rows  32.. 64 : wk                 (D_MODEL, D_QK)
R_WV = R_WK + D_MODEL         # rows  64.. 96 : wv                 (D_MODEL, D_VV)
R_WO = R_WV + D_MODEL         # rows  96..128 : wo                 (D_VV, D_MODEL)
R_W1 = R_WO + D_VV            # rows 128..160 : w1                 (D_MODEL, D_FF)
R_W2 = R_W1 + D_MODEL         # rows 160..224 : w2                 (D_FF, D_MODEL)
R_VEC = R_W2 + D_FF           # 224: start of per-row vectors
ROW_BQ = R_VEC + 0            # bq * 1/sqrt(d_k)
ROW_BK = R_VEC + 1
ROW_BV = R_VEC + 2
ROW_BO = R_VEC + 3
ROW_B1 = R_VEC + 4
ROW_B2 = R_VEC + 5
ROW_LN1G = R_VEC + 6
ROW_LN1B = R_VEC + 7
ROW_LN2G = R_VEC + 8
ROW_LN2B = R_VEC + 9
W_ROWS = ((R_VEC + 10 + 7) // 8) * 8  # 240 (multiple of 8 sublanes)
W_COLS = 128                          # one lane tile


def _layer_norm(x, gamma, beta):
    # PyTorch LayerNorm: biased variance over last dim
    mu = jnp.mean(x, axis=-1, keepdims=True)
    xc = x - mu
    var = jnp.mean(xc * xc, axis=-1, keepdims=True)
    inv = lax.rsqrt(var + LN_EPS)
    return xc * inv * gamma + beta


def encoder_layer_kernel(q_ref, k_ref, v_ref, w_ref, o_ref):
    # q_ref/k_ref/v_ref: (B*N, D_MODEL); w_ref: (W_ROWS, 128) packed weights/biases
    q_in = q_ref[...]                                     # (16, 32) residual input
    k_in = k_ref[...]
    v_in = v_ref[...]

    # ---------------- Q/K/V projections (dense weight tiles, scale folded in wq/bq) ----------------
    wq = w_ref[R_WQ:R_WQ + D_MODEL, 0:D_QK]
    wk = w_ref[R_WK:R_WK + D_MODEL, 0:D_QK]
    wv = w_ref[R_WV:R_WV + D_MODEL, 0:D_VV]
    bq = w_ref[ROW_BQ:ROW_BQ + 1, 0:D_QK]
    bk = w_ref[ROW_BK:ROW_BK + 1, 0:D_QK]
    bv = w_ref[ROW_BV:ROW_BV + 1, 0:D_VV]
    qp = jnp.dot(q_in, wq, preferred_element_type=jnp.float32) + bq   # (16, 32), pre-scaled
    kp = jnp.dot(k_in, wk, preferred_element_type=jnp.float32) + bk   # (16, 32)
    vp = jnp.dot(v_in, wv, preferred_element_type=jnp.float32) + bv   # (16, 32)

    w_o = w_ref[R_WO:R_WO + D_VV, 0:D_MODEL]              # (32, 32)
    b_o = w_ref[ROW_BO:ROW_BO + 1, 0:D_MODEL]             # (1, 32)

    # ---------------- attention scores for all (b, h), softmax batched across the stack ----------------
    s_tiles = []
    for b in range(B):                                    # static unroll (tiny dims)
        r0 = b * N
        for h in range(H):
            qh = qp[r0:r0 + N, h * D_K:(h + 1) * D_K]     # (8, 8)
            kh = kp[r0:r0 + N, h * D_K:(h + 1) * D_K]     # (8, 8)
            # q @ k^T without an explicit transpose: contract dim 1 of both operands.
            s_tiles.append(lax.dot_general(qh, kh, (((1,), (1,)), ((), ())),
                                           preferred_element_type=jnp.float32))
    s = jnp.concatenate(s_tiles, axis=0)                  # (B*H*N, N) = (64, 8), sublane-aligned

    # one max / exp / sum / divide for ALL heads (2 XLU reduces + 1 EUP exp instead of 16 each)
    s = s - jnp.max(s, axis=-1, keepdims=True)
    p = jnp.exp(s)
    p = p / jnp.sum(p, axis=-1, keepdims=True)            # exact reciprocal (kernel is not EUP-bound)

    # ---------------- P @ V and per-head W_o fold (implicit head concat via MXU accumulation) ----------------
    att_rows = []
    t = 0
    for b in range(B):
        r0 = b * N
        att_b = jnp.zeros((N, D_MODEL), jnp.float32)
        for h in range(H):
            ph = p[t * N:(t + 1) * N, :]                                       # (8, 8)
            vh = vp[r0:r0 + N, h * D_V:(h + 1) * D_V]                          # (8, 8)
            head_out = jnp.dot(ph, vh, preferred_element_type=jnp.float32)     # (8, 8)
            att_b = att_b + jnp.dot(head_out, w_o[h * D_V:(h + 1) * D_V, :],
                                    preferred_element_type=jnp.float32)        # (8, 32)
            t += 1
        att_rows.append(att_b)
    att = jnp.concatenate(att_rows, axis=0) + b_o         # (16, 32)

    # residual + LayerNorm (dropout == identity at inference)
    ln1_g = w_ref[ROW_LN1G:ROW_LN1G + 1, 0:D_MODEL]
    ln1_b = w_ref[ROW_LN1B:ROW_LN1B + 1, 0:D_MODEL]
    mh = _layer_norm(q_in + att, ln1_g, ln1_b)            # (16, 32)

    # ---------------- position-wise feed forward ----------------
    w1 = w_ref[R_W1:R_W1 + D_MODEL, 0:D_FF]
    b1 = w_ref[ROW_B1:ROW_B1 + 1, 0:D_FF]
    w2 = w_ref[R_W2:R_W2 + D_FF, 0:D_MODEL]
    b2 = w_ref[ROW_B2:ROW_B2 + 1, 0:D_MODEL]
    hdn = jnp.maximum(jnp.dot(mh, w1, preferred_element_type=jnp.float32) + b1, 0.0)
    ffo = jnp.dot(hdn, w2, preferred_element_type=jnp.float32) + b2
    ln2_g = w_ref[ROW_LN2G:ROW_LN2G + 1, 0:D_MODEL]
    ln2_b = w_ref[ROW_LN2B:ROW_LN2B + 1, 0:D_MODEL]
    out = _layer_norm(mh + ffo, ln2_g, ln2_b)             # (16, 32)

    # TODO(synk): output last dim is 32 lanes (<128) -> masked stores; lane-dense once D_MODEL is a multiple of 128.
    o_ref[...] = out.astype(o_ref.dtype)


def pack_params(p):
    """Pack all weights/biases into one (W_ROWS, 128) f32 slab.  Call ONCE at init
    (not per forward): it is ~14 dynamic-update-slice XLA ops + an HBM write."""
    scale = 1.0 / math.sqrt(D_K)
    W = jnp.zeros((W_ROWS, W_COLS), jnp.float32)
    W = W.at[R_WQ:R_WQ + D_MODEL, 0:D_QK].set(p["wq"] * scale)   # fold 1/sqrt(d_k)
    W = W.at[R_WK:R_WK + D_MODEL, 0:D_QK].set(p["wk"])
    W = W.at[R_WV:R_WV + D_MODEL, 0:D_VV].set(p["wv"])
    W = W.at[R_WO:R_WO + D_VV, 0:D_MODEL].set(p["wo"])
    W = W.at[R_W1:R_W1 + D_MODEL, 0:D_FF].set(p["w1"])
    W = W.at[R_W2:R_W2 + D_FF, 0:D_MODEL].set(p["w2"])
    W = W.at[ROW_BQ, 0:D_QK].set(p["bq"][0] * scale)             # bias scaled too
    W = W.at[ROW_BK, 0:D_QK].set(p["bk"][0])
    W = W.at[ROW_BV, 0:D_VV].set(p["bv"][0])
    W = W.at[ROW_BO, 0:D_MODEL].set(p["bo"][0])
    W = W.at[ROW_B1, 0:D_FF].set(p["b1"][0])
    W = W.at[ROW_B2, 0:D_MODEL].set(p["b2"][0])
    W = W.at[ROW_LN1G, 0:D_MODEL].set(p["ln1_g"][0])
    W = W.at[ROW_LN1B, 0:D_MODEL].set(p["ln1_b"][0])
    W = W.at[ROW_LN2G, 0:D_MODEL].set(p["ln2_g"][0])
    W = W.at[ROW_LN2B, 0:D_MODEL].set(p["ln2_b"][0])
    return W


def encoder_layer(queries, keys, values, wbuf):
    """Forward pass.  `wbuf` is the pre-packed weight slab from pack_params()."""
    b, n, d = queries.shape
    assert (b, n, d) == (B, N, D_MODEL)
    # Fold (B, N) into the sublane axis: pure reshape metadata, no wrapper concat.
    q2 = queries.reshape(B * N, D_MODEL)
    k2 = keys.reshape(B * N, D_MODEL)
    v2 = values.reshape(B * N, D_MODEL)

    act_spec = pl.BlockSpec((B * N, D_MODEL), lambda i: (0, 0))
    out = pl.pallas_call(
        encoder_layer_kernel,
        out_shape=jax.ShapeDtypeStruct((B * N, D_MODEL), jnp.float32),
        grid_spec=pltpu.PrefetchScalarGridSpec(
            num_scalar_prefetch=0,
            grid=(1,),                                     # whole batch in one grid step
            in_specs=[act_spec, act_spec, act_spec,
                      pl.BlockSpec((W_ROWS, W_COLS), lambda i: (0, 0))],
            out_specs=pl.BlockSpec((B * N, D_MODEL), lambda i: (0, 0)),
        ),
        compiler_params=pltpu.CompilerParams(dimension_semantics=("arbitrary",)),
    )(q2, k2, v2, wbuf)
    return out.reshape(B, N, D_MODEL)


# ----------------------------- reference (plain JAX) -----------------------------
def encoder_layer_ref(queries, keys, values, p):
    def ln(x, g, b):
        mu = jnp.mean(x, -1, keepdims=True)
        var = jnp.mean((x - mu) ** 2, -1, keepdims=True)
        return (x - mu) / jnp.sqrt(var + LN_EPS) * g + b

    q = (queries @ p["wq"] + p["bq"]).reshape(B, N, H, D_K).transpose(0, 2, 1, 3)
    k = (keys    @ p["wk"] + p["bk"]).reshape(B, N, H, D_K).transpose(0, 2, 3, 1)
    v = (values  @ p["wv"] + p["bv"]).reshape(B, N, H, D_V).transpose(0, 2, 1, 3)
    att = jnp.matmul(q, k) / math.sqrt(D_K)
    att = jax.nn.softmax(att, -1)
    out = jnp.matmul(att, v).transpose(0, 2, 1, 3).reshape(B, N, H * D_V)
    out = out @ p["wo"] + p["bo"]
    mh = ln(queries + out, p["ln1_g"], p["ln1_b"])
    ff = jax.nn.relu(mh @ p["w1"] + p["b1"]) @ p["w2"] + p["b2"]
    return ln(mh + ff, p["ln2_g"], p["ln2_b"])


def make_params(key):
    keys = jax.random.split(key, 12)

    def init(k, shape, fan_in):
        bound = 1.0 / math.sqrt(fan_in)
        return jax.random.uniform(k, shape, jnp.float32, -bound, bound)

    params = {
        "wq": init(keys[0], (D_MODEL, H * D_K), D_MODEL),
        "bq": init(keys[1], (1, H * D_K), D_MODEL),
        "wk": init(keys[2], (D_MODEL, H * D_K), D_MODEL),
        "bk": init(keys[3], (1, H * D_K), D_MODEL),
        "wv": init(keys[4], (D_MODEL, H * D_V), D_MODEL),
        "bv": init(keys[5], (1, H * D_V), D_MODEL),
        "wo": init(keys[6], (H * D_V, D_MODEL), H * D_V),
        "bo": init(keys[7], (1, D_MODEL), H * D_V),
        "ln1_g": jnp.ones((1, D_MODEL), jnp.float32),
        "ln1_b": jnp.zeros((1, D_MODEL), jnp.float32),
        "w1": init(keys[8], (D_MODEL, D_FF), D_MODEL),
        "b1": init(keys[9], (1, D_FF), D_MODEL),
        "w2": init(keys[10], (D_FF, D_MODEL), D_FF),
        "b2": init(keys[11], (1, D_MODEL), D_FF),
        "ln2_g": jnp.ones((1, D_MODEL), jnp.float32),
        "ln2_b": jnp.zeros((1, D_MODEL), jnp.float32),
    }
    return params


if __name__ == "__main__":
    root = jax.random.PRNGKey(0)
    kq, kk, kv, kp = jax.random.split(root, 4)
    queries = jax.random.normal(kq, (B, N, D_MODEL), jnp.float32)
    keys = jax.random.normal(kk, (B, N, D_MODEL), jnp.float32)
    values = jax.random.normal(kv, (B, N, D_MODEL), jnp.float32)
    params = make_params(kp)

    # Init-time: pack weights once, reuse for every forward call.
    wbuf = jax.block_until_ready(pack_params(params))

    out = encoder_layer(queries, keys, values, wbuf)
    out = jax.block_until_ready(out)

    ref = encoder_layer_ref(queries, keys, values, params)
    assert out.shape == (B, N, D_MODEL)
    assert jnp.allclose(out, ref, atol=1e-4, rtol=1e-4), "Pallas kernel mismatch vs JAX reference"
    print("KERNEL_OK")
</pallas_src>

<mosaic_0001>
module attributes {stable_mosaic.version = 11 : i64} {
  func.func @encoder_layer_kernel(%arg0: i32, %arg1: memref<16x32xf32, #tpu.memory_space<vmem>>, %arg2: memref<16x32xf32, #tpu.memory_space<vmem>>, %arg3: memref<16x32xf32, #tpu.memory_space<vmem>>, %arg4: memref<240x128xf32, #tpu.memory_space<vmem>>, %arg5: memref<16x32xf32, #tpu.memory_space<vmem>>) attributes {dimension_semantics = [#tpu.dimension_semantics<arbitrary>], iteration_bounds = array<i64: 1>, scalar_prefetch = 0 : i64, scratch_operands = 0 : i64, tpu.core_type = #tpu.core_type<tc>, window_params = [{pipeline_mode = #tpu.pipeline_mode<synchronous>, transform_indices = @transform_0, window_bounds = array<i64: 16, 32>}, {pipeline_mode = #tpu.pipeline_mode<synchronous>, transform_indices = @transform_1, window_bounds = array<i64: 16, 32>}, {pipeline_mode = #tpu.pipeline_mode<synchronous>, transform_indices = @transform_2, window_bounds = array<i64: 16, 32>}, {pipeline_mode = #tpu.pipeline_mode<synchronous>, transform_indices = @transform_3, window_bounds = array<i64: 240, 128>}, {pipeline_mode = #tpu.pipeline_mode<synchronous>, transform_indices = @transform_4, window_bounds = array<i64: 16, 32>}]} {
    %c0 = arith.constant 0 : index
    %c0_0 = arith.constant 0 : index
    %0 = vector.load %arg1[%c0, %c0_0] : memref<16x32xf32, #tpu.memory_space<vmem>>, vector<16x32xf32>
    %c0_1 = arith.constant 0 : index
    %c0_2 = arith.constant 0 : index
    %1 = vector.load %arg2[%c0_1, %c0_2] : memref<16x32xf32, #tpu.memory_space<vmem>>, vector<16x32xf32>
    %c0_3 = arith.constant 0 : index
    %c0_4 = arith.constant 0 : index
    %2 = vector.load %arg3[%c0_3, %c0_4] : memref<16x32xf32, #tpu.memory_space<vmem>>, vector<16x32xf32>
    %c0_5 = arith.constant 0 : index
    %c0_6 = arith.constant 0 : index
    %3 = vector.load %arg4[%c0_5, %c0_6] : memref<240x128xf32, #tpu.memory_space<vmem>>, vector<32x32xf32>
    %c32 = arith.constant 32 : index
    %c0_7 = arith.constant 0 : index
    %4 = vector.load %arg4[%c32, %c0_7] : memref<240x128xf32, #tpu.memory_space<vmem>>, vector<32x32xf32>
    %c64 = arith.constant 64 : index
    %c0_8 = arith.constant 0 : index
    %5 = vector.load %arg4[%c64, %c0_8] : memref<240x128xf32, #tpu.memory_space<vmem>>, vector<32x32xf32>
    %c224 = arith.constant 224 : index
    %c0_9 = arith.constant 0 : index
    %6 = vector.load %arg4[%c224, %c0_9] : memref<240x128xf32, #tpu.memory_space<vmem>>, vector<1x32xf32>
    %c225 = arith.constant 225 : index
    %c0_10 = arith.constant 0 : index
    %7 = vector.load %arg4[%c225, %c0_10] : memref<240x128xf32, #tpu.memory_space<vmem>>, vector<1x32xf32>
    %c226 = arith.constant 226 : index
    %c0_11 = arith.constant 0 : index
    %8 = vector.load %arg4[%c226, %c0_11] : memref<240x128xf32, #tpu.memory_space<vmem>>, vector<1x32xf32>
    %cst = arith.constant dense<0.000000e+00> : vector<16x32xf32>
    %9 = tpu.matmul %0, %3, %cst {dimension_numbers = #tpu.dot_dimension_numbers<[1], [0], [0], [1], [0, 0, 1, 1], [], []>} : vector<16x32xf32>, vector<32x32xf32>, vector<16x32xf32> -> vector<16x32xf32>
    %10 = vector.broadcast %6 : vector<1x32xf32> to vector<16x32xf32>
    %11 = arith.addf %9, %10 : vector<16x32xf32>
    %cst_12 = arith.constant dense<0.000000e+00> : vector<16x32xf32>
    %12 = tpu.matmul %1, %4, %cst_12 {dimension_numbers = #tpu.dot_dimension_numbers<[1], [0], [0], [1], [0, 0, 1, 1], [], []>} : vector<16x32xf32>, vector<32x32xf32>, vector<16x32xf32> -> vector<16x32xf32>
    %13 = vector.broadcast %7 : vector<1x32xf32> to vector<16x32xf32>
    %14 = arith.addf %12, %13 : vector<16x32xf32>
    %cst_13 = arith.constant dense<0.000000e+00> : vector<16x32xf32>
    %15 = tpu.matmul %2, %5, %cst_13 {dimension_numbers = #tpu.dot_dimension_numbers<[1], [0], [0], [1], [0, 0, 1, 1], [], []>} : vector<16x32xf32>, vector<32x32xf32>, vector<16x32xf32> -> vector<16x32xf32>
    %16 = vector.broadcast %8 : vector<1x32xf32> to vector<16x32xf32>
    %17 = arith.addf %15, %16 : vector<16x32xf32>
    %c96 = arith.constant 96 : index
    %c0_14 = arith.constant 0 : index
    %18 = vector.load %arg4[%c96, %c0_14] : memref<240x128xf32, #tpu.memory_space<vmem>>, vector<32x32xf32>
    %c227 = arith.constant 227 : index
    %c0_15 = arith.constant 0 : index
    %19 = vector.load %arg4[%c227, %c0_15] : memref<240x128xf32, #tpu.memory_space<vmem>>, vector<1x32xf32>
    %20 = vector.extract_strided_slice %11 {offsets = [0, 0], sizes = [8, 8], strides = [1, 1]} : vector<16x32xf32> to vector<8x8xf32>
    %21 = vector.extract_strided_slice %14 {offsets = [0, 0], sizes = [8, 8], strides = [1, 1]} : vector<16x32xf32> to vector<8x8xf32>
    %cst_16 = arith.constant dense<0.000000e+00> : vector<8x8xf32>
    %22 = tpu.matmul %20, %21, %cst_16 {dimension_numbers = #tpu.dot_dimension_numbers<[1], [1], [0], [0], [0, 0, 1, 0], [], []>} : vector<8x8xf32>, vector<8x8xf32>, vector<8x8xf32> -> vector<8x8xf32>
    %23 = vector.extract_strided_slice %11 {offsets = [0, 8], sizes = [8, 8], strides = [1, 1]} : vector<16x32xf32> to vector<8x8xf32>
    %24 = vector.extract_strided_slice %14 {offsets = [0, 8], sizes = [8, 8], strides = [1, 1]} : vector<16x32xf32> to vector<8x8xf32>
    %cst_17 = arith.constant dense<0.000000e+00> : vector<8x8xf32>
    %25 = tpu.matmul %23, %24, %cst_17 {dimension_numbers = #tpu.dot_dimension_numbers<[1], [1], [0], [0], [0, 0, 1, 0], [], []>} : vector<8x8xf32>, vector<8x8xf32>, vector<8x8xf32> -> vector<8x8xf32>
    %26 = vector.extract_strided_slice %11 {offsets = [0, 16], sizes = [8, 8], strides = [1, 1]} : vector<16x32xf32> to vector<8x8xf32>
    %27 = vector.extract_strided_slice %14 {offsets = [0, 16], sizes = [8, 8], strides = [1, 1]} : vector<16x32xf32> to vector<8x8xf32>
    %cst_18 = arith.constant dense<0.000000e+00> : vector<8x8xf32>
    %28 = tpu.matmul %26, %27, %cst_18 {dimension_numbers = #tpu.dot_dimension_numbers<[1], [1], [0], [0], [0, 0, 1, 0], [], []>} : vector<8x8xf32>, vector<8x8xf32>, vector<8x8xf32> -> vector<8x8xf32>
    %29 = vector.extract_strided_slice %11 {offsets = [0, 24], sizes = [8, 8], strides = [1, 1]} : vector<16x32xf32> to vector<8x8xf32>
    %30 = vector.extract_strided_slice %14 {offsets = [0, 24], sizes = [8, 8], strides = [1, 1]} : vector<16x32xf32> to vector<8x8xf32>
    %cst_19 = arith.constant dense<0.000000e+00> : vector<8x8xf32>
    %31 = tpu.matmul %29, %30, %cst_19 {dimension_numbers = #tpu.dot_dimension_numbers<[1], [1], [0], [0], [0, 0, 1, 0], [], []>} : vector<8x8xf32>, vector<8x8xf32>, vector<8x8xf32> -> vector<8x8xf32>
    %32 = vector.extract_strided_slice %11 {offsets = [8, 0], sizes = [8, 8], strides = [1, 1]} : vector<16x32xf32> to vector<8x8xf32>
    %33 = vector.extract_strided_slice %14 {offsets = [8, 0], sizes = [8, 8], strides = [1, 1]} : vector<16x32xf32> to vector<8x8xf32>
    %cst_20 = arith.constant dense<0.000000e+00> : vector<8x8xf32>
    %34 = tpu.matmul %32, %33, %cst_20 {dimension_numbers = #tpu.dot_dimension_numbers<[1], [1], [0], [0], [0, 0, 1, 0], [], []>} : vector<8x8xf32>, vector<8x8xf32>, vector<8x8xf32> -> vector<8x8xf32>
    %35 = vector.extract_strided_slice %11 {offsets = [8, 8], sizes = [8, 8], strides = [1, 1]} : vector<16x32xf32> to vector<8x8xf32>
    %36 = vector.extract_strided_slice %14 {offsets = [8, 8], sizes = [8, 8], strides = [1, 1]} : vector<16x32xf32> to vector<8x8xf32>
    %cst_21 = arith.constant dense<0.000000e+00> : vector<8x8xf32>
    %37 = tpu.matmul %35, %36, %cst_21 {dimension_numbers = #tpu.dot_dimension_numbers<[1], [1], [0], [0], [0, 0, 1, 0], [], []>} : vector<8x8xf32>, vector<8x8xf32>, vector<8x8xf32> -> vector<8x8xf32>
    %38 = vector.extract_strided_slice %11 {offsets = [8, 16], sizes = [8, 8], strides = [1, 1]} : vector<16x32xf32> to vector<8x8xf32>
    %39 = vector.extract_strided_slice %14 {offsets = [8, 16], sizes = [8, 8], strides = [1, 1]} : vector<16x32xf32> to vector<8x8xf32>
    %cst_22 = arith.constant dense<0.000000e+00> : vector<8x8xf32>
    %40 = tpu.matmul %38, %39, %cst_22 {dimension_numbers = #tpu.dot_dimension_numbers<[1], [1], [0], [0], [0, 0, 1, 0], [], []>} : vector<8x8xf32>, vector<8x8xf32>, vector<8x8xf32> -> vector<8x8xf32>
    %41 = vector.extract_strided_slice %11 {offsets = [8, 24], sizes = [8, 8], strides = [1, 1]} : vector<16x32xf32> to vector<8x8xf32>
    %42 = vector.extract_strided_slice %14 {offsets = [8, 24], sizes = [8, 8], strides = [1, 1]} : vector<16x32xf32> to vector<8x8xf32>
    %cst_23 = arith.constant dense<0.000000e+00> : vector<8x8xf32>
    %43 = tpu.matmul %41, %42, %cst_23 {dimension_numbers = #tpu.dot_dimension_numbers<[1], [1], [0], [0], [0, 0, 1, 0], [], []>} : vector<8x8xf32>, vector<8x8xf32>, vector<8x8xf32> -> vector<8x8xf32>
    %44 = tpu.concatenate %22, %25, %28, %31, %34, %37, %40, %43 in 0 : vector<8x8xf32>, vector<8x8xf32>, vector<8x8xf32>, vector<8x8xf32>, vector<8x8xf32>, vector<8x8xf32>, vector<8x8xf32>, vector<8x8xf32> -> vector<64x8xf32>
    %cst_24 = arith.constant dense<0xFF800000> : vector<64xf32>
    %45 = vector.multi_reduction <maximumf>, %44, %cst_24 [1] : vector<64x8xf32> to vector<64xf32>
    %46 = vector.shape_cast %45 : vector<64xf32> to vector<64x1xf32>
    %47 = vector.broadcast %46 : vector<64x1xf32> to vector<64x8xf32>
    %48 = arith.subf %44, %47 : vector<64x8xf32>
    %49 = math.exp %48 : vector<64x8xf32>
    %cst_25 = arith.constant dense<0.000000e+00> : vector<64xf32>
    %50 = vector.multi_reduction <add>, %49, %cst_25 [1] : vector<64x8xf32> to vector<64xf32>
    %51 = vector.shape_cast %50 : vector<64xf32> to vector<64x1xf32>
    %52 = vector.broadcast %51 : vector<64x1xf32> to vector<64x8xf32>
    %53 = arith.divf %49, %52 : vector<64x8xf32>
    %cst_26 = arith.constant 0.000000e+00 : f32
    %54 = vector.broadcast %cst_26 : f32 to vector<8x32xf32>
    %55 = vector.extract_strided_slice %53 {offsets = [0, 0], sizes = [8, 8], strides = [1, 1]} : vector<64x8xf32> to vector<8x8xf32>
    %56 = vector.extract_strided_slice %17 {offsets = [0, 0], sizes = [8, 8], strides = [1, 1]} : vector<16x32xf32> to vector<8x8xf32>
    %cst_27 = arith.constant dense<0.000000e+00> : vector<8x8xf32>
    %57 = tpu.matmul %55, %56, %cst_27 {dimension_numbers = #tpu.dot_dimension_numbers<[1], [0], [0], [1], [0, 0, 1, 1], [], []>} : vector<8x8xf32>, vector<8x8xf32>, vector<8x8xf32> -> vector<8x8xf32>
    %58 = vector.extract_strided_slice %18 {offsets = [0, 0], sizes = [8, 32], strides = [1, 1]} : vector<32x32xf32> to vector<8x32xf32>
    %cst_28 = arith.constant dense<0.000000e+00> : vector<8x32xf32>
    %59 = tpu.matmul %57, %58, %cst_28 {dimension_numbers = #tpu.dot_dimension_numbers<[1], [0], [0], [1], [0, 0, 1, 1], [], []>} : vector<8x8xf32>, vector<8x32xf32>, vector<8x32xf32> -> vector<8x32xf32>
    %60 = arith.addf %54, %59 : vector<8x32xf32>
    %61 = vector.extract_strided_slice %53 {offsets = [8, 0], sizes = [8, 8], strides = [1, 1]} : vector<64x8xf32> to vector<8x8xf32>
    %62 = vector.extract_strided_slice %17 {offsets = [0, 8], sizes = [8, 8], strides = [1, 1]} : vector<16x32xf32> to vector<8x8xf32>
    %cst_29 = arith.constant dense<0.000000e+00> : vector<8x8xf32>
    %63 = tpu.matmul %61, %62, %cst_29 {dimension_numbers = #tpu.dot_dimension_numbers<[1], [0], [0], [1], [0, 0, 1, 1], [], []>} : vector<8x8xf32>, vector<8x8xf32>, vector<8x8xf32> -> vector<8x8xf32>
    %64 = vector.extract_strided_slice %18 {offsets = [8, 0], sizes = [8, 32], strides = [1, 1]} : vector<32x32xf32> to vector<8x32xf32>
    %cst_30 = arith.constant dense<0.000000e+00> : vector<8x32xf32>
    %65 = tpu.matmul %63, %64, %cst_30 {dimension_numbers = #tpu.dot_dimension_numbers<[1], [0], [0], [1], [0, 0, 1, 1], [], []>} : vector<8x8xf32>, vector<8x32xf32>, vector<8x32xf32> -> vector<8x32xf32>
    %66 = arith.addf %60, %65 : vector<8x32xf32>
    %67 = vector.extract_strided_slice %53 {offsets = [16, 0], sizes = [8, 8], strides = [1, 1]} : vector<64x8xf32> to vector<8x8xf32>
    %68 = vector.extract_strided_slice %17 {offsets = [0, 16], sizes = [8, 8], strides = [1, 1]} : vector<16x32xf32> to vector<8x8xf32>
    %cst_31 = arith.constant dense<0.000000e+00> : vector<8x8xf32>
    %69 = tpu.matmul %67, %68, %cst_31 {dimension_numbers = #tpu.dot_dimension_numbers<[1], [0], [0], [1], [0, 0, 1, 1], [], []>} : vector<8x8xf32>, vector<8x8xf32>, vector<8x8xf32> -> vector<8x8xf32>
    %70 = vector.extract_strided_slice %18 {offsets = [16, 0], sizes = [8, 32], strides = [1, 1]} : vector<32x32xf32> to vector<8x32xf32>
    %cst_32 = arith.constant dense<0.000000e+00> : vector<8x32xf32>
    %71 = tpu.matmul %69, %70, %cst_32 {dimension_numbers = #tpu.dot_dimension_numbers<[1], [0], [0], [1], [0, 0, 1, 1], [], []>} : vector<8x8xf32>, vector<8x32xf32>, vector<8x32xf32> -> vector<8x32xf32>
    %72 = arith.addf %66, %71 : vector<8x32xf32>
    %73 = vector.extract_strided_slice %53 {offsets = [24, 0], sizes = [8, 8], strides = [1, 1]} : vector<64x8xf32> to vector<8x8xf32>
    %74 = vector.extract_strided_slice %17 {offsets = [0, 24], sizes = [8, 8], strides = [1, 1]} : vector<16x32xf32> to vector<8x8xf32>
    %cst_33 = arith.constant dense<0.000000e+00> : vector<8x8xf32>
    %75 = tpu.matmul %73, %74, %cst_33 {dimension_numbers = #tpu.dot_dimension_numbers<[1], [0], [0], [1], [0, 0, 1, 1], [], []>} : vector<8x8xf32>, vector<8x8xf32>, vector<8x8xf32> -> vector<8x8xf32>
    %76 = vector.extract_strided_slice %18 {offsets = [24, 0], sizes = [8, 32], strides = [1, 1]} : vector<32x32xf32> to vector<8x32xf32>
    %cst_34 = arith.constant dense<0.000000e+00> : vector<8x32xf32>
    %77 = tpu.matmul %75, %76, %cst_34 {dimension_numbers = #tpu.dot_dimension_numbers<[1], [0], [0], [1], [0, 0, 1, 1], [], []>} : vector<8x8xf32>, vector<8x32xf32>, vector<8x32xf32> -> vector<8x32xf32>
    %78 = arith.addf %72, %77 : vector<8x32xf32>
    %cst_35 = arith.constant 0.000000e+00 : f32
    %79 = vector.broadcast %cst_35 : f32 to vector<8x32xf32>
    %80 = vector.extract_strided_slice %53 {offsets = [32, 0], sizes = [8, 8], strides = [1, 1]} : vector<64x8xf32> to vector<8x8xf32>
    %81 = vector.extract_strided_slice %17 {offsets = [8, 0], sizes = [8, 8], strides = [1, 1]} : vector<16x32xf32> to vector<8x8xf32>
    %cst_36 = arith.constant dense<0.000000e+00> : vector<8x8xf32>
    %82 = tpu.matmul %80, %81, %cst_36 {dimension_numbers = #tpu.dot_dimension_numbers<[1], [0], [0], [1], [0, 0, 1, 1], [], []>} : vector<8x8xf32>, vector<8x8xf32>, vector<8x8xf32> -> vector<8x8xf32>
    %83 = vector.extract_strided_slice %18 {offsets = [0, 0], sizes = [8, 32], strides = [1, 1]} : vector<32x32xf32> to vector<8x32xf32>
    %cst_37 = arith.constant dense<0.000000e+00> : vector<8x32xf32>
    %84 = tpu.matmul %82, %83, %cst_37 {dimension_numbers = #tpu.dot_dimension_numbers<[1], [0], [0], [1], [0, 0, 1, 1], [], []>} : vector<8x8xf32>, vector<8x32xf32>, vector<8x32xf32> -> vector<8x32xf32>
    %85 = arith.addf %79, %84 : vector<8x32xf32>
    %86 = vector.extract_strided_slice %53 {offsets = [40, 0], sizes = [8, 8], strides = [1, 1]} : vector<64x8xf32> to vector<8x8xf32>
    %87 = vector.extract_strided_slice %17 {offsets = [8, 8], sizes = [8, 8], strides = [1, 1]} : vector<16x32xf32> to vector<8x8xf32>
    %cst_38 = arith.constant dense<0.000000e+00> : vector<8x8xf32>
    %88 = tpu.matmul %86, %87, %cst_38 {dimension_numbers = #tpu.dot_dimension_numbers<[1], [0], [0], [1], [0, 0, 1, 1], [], []>} : vector<8x8xf32>, vector<8x8xf32>, vector<8x8xf32> -> vector<8x8xf32>
    %89 = vector.extract_strided_slice %18 {offsets = [8, 0], sizes = [8, 32], strides = [1, 1]} : vector<32x32xf32> to vector<8x32xf32>
    %cst_39 = arith.constant dense<0.000000e+00> : vector<8x32xf32>
    %90 = tpu.matmul %88, %89, %cst_39 {dimension_numbers = #tpu.dot_dimension_numbers<[1], [0], [0], [1], [0, 0, 1, 1], [], []>} : vector<8x8xf32>, vector<8x32xf32>, vector<8x32xf32> -> vector<8x32xf32>
    %91 = arith.addf %85, %90 : vector<8x32xf32>
    %92 = vector.extract_strided_slice %53 {offsets = [48, 0], sizes = [8, 8], strides = [1, 1]} : vector<64x8xf32> to vector<8x8xf32>
    %93 = vector.extract_strided_slice %17 {offsets = [8, 16], sizes = [8, 8], strides = [1, 1]} : vector<16x32xf32> to vector<8x8xf32>
    %cst_40 = arith.constant dense<0.000000e+00> : vector<8x8xf32>
    %94 = tpu.matmul %92, %93, %cst_40 {dimension_numbers = #tpu.dot_dimension_numbers<[1], [0], [0], [1], [0, 0, 1, 1], [], []>} : vector<8x8xf32>, vector<8x8xf32>, vector<8x8xf32> -> vector<8x8xf32>
    %95 = vector.extract_strided_slice %18 {offsets = [16, 0], sizes = [8, 32], strides = [1, 1]} : vector<32x32xf32> to vector<8x32xf32>
    %cst_41 = arith.constant dense<0.000000e+00> : vector<8x32xf32>
    %96 = tpu.matmul %94, %95, %cst_41 {dimension_numbers = #tpu.dot_dimension_numbers<[1], [0], [0], [1], [0, 0, 1, 1], [], []>} : vector<8x8xf32>, vector<8x32xf32>, vector<8x32xf32> -> vector<8x32xf32>
    %97 = arith.addf %91, %96 : vector<8x32xf32>
    %98 = vector.extract_strided_slice %53 {offsets = [56, 0], sizes = [8, 8], strides = [1, 1]} : vector<64x8xf32> to vector<8x8xf32>
    %99 = vector.extract_strided_slice %17 {offsets = [8, 24], sizes = [8, 8], strides = [1, 1]} : vector<16x32xf32> to vector<8x8xf32>
    %cst_42 = arith.constant dense<0.000000e+00> : vector<8x8xf32>
    %100 = tpu.matmul %98, %99, %cst_42 {dimension_numbers = #tpu.dot_dimension_numbers<[1], [0], [0], [1], [0, 0, 1, 1], [], []>} : vector<8x8xf32>, vector<8x8xf32>, vector<8x8xf32> -> vector<8x8xf32>
    %101 = vector.extract_strided_slice %18 {offsets = [24, 0], sizes = [8, 32], strides = [1, 1]} : vector<32x32xf32> to vector<8x32xf32>
    %cst_43 = arith.constant dense<0.000000e+00> : vector<8x32xf32>
    %102 = tpu.matmul %100, %101, %cst_43 {dimension_numbers = #tpu.dot_dimension_numbers<[1], [0], [0], [1], [0, 0, 1, 1], [], []>} : vector<8x8xf32>, vector<8x32xf32>, vector<8x32xf32> -> vector<8x32xf32>
    %103 = arith.addf %97, %102 : vector<8x32xf32>
    %104 = tpu.concatenate %78, %103 in 0 : vector<8x32xf32>, vector<8x32xf32> -> vector<16x32xf32>
    %105 = vector.broadcast %19 : vector<1x32xf32> to vector<16x32xf32>
    %106 = arith.addf %104, %105 : vector<16x32xf32>
    %c230 = arith.constant 230 : index
    %c0_44 = arith.constant 0 : index
    %107 = vector.load %arg4[%c230, %c0_44] : memref<240x128xf32, #tpu.memory_space<vmem>>, vector<1x32xf32>
    %c231 = arith.constant 231 : index
    %c0_45 = arith.constant 0 : index
    %108 = vector.load %arg4[%c231, %c0_45] : memref<240x128xf32, #tpu.memory_space<vmem>>, vector<1x32xf32>
    %109 = arith.addf %0, %106 : vector<16x32xf32>
    %cst_46 = arith.constant dense<0.000000e+00> : vector<16xf32>
    %110 = vector.multi_reduction <add>, %109, %cst_46 [1] : vector<16x32xf32> to vector<16xf32>
    %111 = vector.shape_cast %110 : vector<16xf32> to vector<16x1xf32>
    %cst_47 = arith.constant 3.200000e+01 : f32
    %112 = vector.broadcast %cst_47 : f32 to vector<16x1xf32>
    %113 = arith.divf %111, %112 : vector<16x1xf32>
    %114 = vector.broadcast %113 : vector<16x1xf32> to vector<16x32xf32>
    %115 = arith.subf %109, %114 : vector<16x32xf32>
    %116 = arith.mulf %115, %115 : vector<16x32xf32>
    %cst_48 = arith.constant dense<0.000000e+00> : vector<16xf32>
    %117 = vector.multi_reduction <add>, %116, %cst_48 [1] : vector<16x32xf32> to vector<16xf32>
    %118 = vector.shape_cast %117 : vector<16xf32> to vector<16x1xf32>
    %cst_49 = arith.constant 3.200000e+01 : f32
    %119 = vector.broadcast %cst_49 : f32 to vector<16x1xf32>
    %120 = arith.divf %118, %119 : vector<16x1xf32>
    %cst_50 = arith.constant 9.99999974E-6 : f32
    %121 = vector.broadcast %cst_50 : f32 to vector<16x1xf32>
    %122 = arith.addf %120, %121 : vector<16x1xf32>
    %123 = math.rsqrt %122 : vector<16x1xf32>
    %124 = vector.broadcast %123 : vector<16x1xf32> to vector<16x32xf32>
    %125 = arith.mulf %115, %124 : vector<16x32xf32>
    %126 = vector.broadcast %107 : vector<1x32xf32> to vector<16x32xf32>
    %127 = arith.mulf %125, %126 : vector<16x32xf32>
    %128 = vector.broadcast %108 : vector<1x32xf32> to vector<16x32xf32>
    %129 = arith.addf %127, %128 : vector<16x32xf32>
    %c128 = arith.constant 128 : index
    %c0_51 = arith.constant 0 : index
    %130 = vector.load %arg4[%c128, %c0_51] : memref<240x128xf32, #tpu.memory_space<vmem>>, vector<32x64xf32>
    %c228 = arith.constant 228 : index
    %c0_52 = arith.constant 0 : index
    %131 = vector.load %arg4[%c228, %c0_52] : memref<240x128xf32, #tpu.memory_space<vmem>>, vector<1x64xf32>
    %c160 = arith.constant 160 : index
    %c0_53 = arith.constant 0 : index
    %132 = vector.load %arg4[%c160, %c0_53] : memref<240x128xf32, #tpu.memory_space<vmem>>, vector<64x32xf32>
    %c229 = arith.constant 229 : index
    %c0_54 = arith.constant 0 : index
    %133 = vector.load %arg4[%c229, %c0_54] : memref<240x128xf32, #tpu.memory_space<vmem>>, vector<1x32xf32>
    %cst_55 = arith.constant dense<0.000000e+00> : vector<16x64xf32>
    %134 = tpu.matmul %129, %130, %cst_55 {dimension_numbers = #tpu.dot_dimension_numbers<[1], [0], [0], [1], [0, 0, 1, 1], [], []>} : vector<16x32xf32>, vector<32x64xf32>, vector<16x64xf32> -> vector<16x64xf32>
    %135 = vector.broadcast %131 : vector<1x64xf32> to vector<16x64xf32>
    %136 = arith.addf %134, %135 : vector<16x64xf32>
    %cst_56 = arith.constant 0.000000e+00 : f32
    %137 = vector.broadcast %cst_56 : f32 to vector<16x64xf32>
    %138 = arith.maximumf %136, %137 : vector<16x64xf32>
    %cst_57 = arith.constant dense<0.000000e+00> : vector<16x32xf32>
    %139 = tpu.matmul %138, %132, %cst_57 {dimension_numbers = #tpu.dot_dimension_numbers<[1], [0], [0], [1], [0, 0, 1, 1], [], []>} : vector<16x64xf32>, vector<64x32xf32>, vector<16x32xf32> -> vector<16x32xf32>
    %140 = vector.broadcast %133 : vector<1x32xf32> to vector<16x32xf32>
    %141 = arith.addf %139, %140 : vector<16x32xf32>
    %c232 = arith.constant 232 : index
    %c0_58 = arith.constant 0 : index
    %142 = vector.load %arg4[%c232, %c0_58] : memref<240x128xf32, #tpu.memory_space<vmem>>, vector<1x32xf32>
    %c233 = arith.constant 233 : index
    %c0_59 = arith.constant 0 : index
    %143 = vector.load %arg4[%c233, %c0_59] : memref<240x128xf32, #tpu.memory_space<vmem>>, vector<1x32xf32>
    %144 = arith.addf %129, %141 : vector<16x32xf32>
    %cst_60 = arith.constant dense<0.000000e+00> : vector<16xf32>
    %145 = vector.multi_reduction <add>, %144, %cst_60 [1] : vector<16x32xf32> to vector<16xf32>
    %146 = vector.shape_cast %145 : vector<16xf32> to vector<16x1xf32>
    %cst_61 = arith.constant 3.200000e+01 : f32
    %147 = vector.broadcast %cst_61 : f32 to vector<16x1xf32>
    %148 = arith.divf %146, %147 : vector<16x1xf32>
    %149 = vector.broadcast %148 : vector<16x1xf32> to vector<16x32xf32>
    %150 = arith.subf %144, %149 : vector<16x32xf32>
    %151 = arith.mulf %150, %150 : vector<16x32xf32>
    %cst_62 = arith.constant dense<0.000000e+00> : vector<16xf32>
    %152 = vector.multi_reduction <add>, %151, %cst_62 [1] : vector<16x32xf32> to vector<16xf32>
    %153 = vector.shape_cast %152 : vector<16xf32> to vector<16x1xf32>
    %cst_63 = arith.constant 3.200000e+01 : f32
    %154 = vector.broadcast %cst_63 : f32 to vector<16x1xf32>
    %155 = arith.divf %153, %154 : vector<16x1xf32>
    %cst_64 = arith.constant 9.99999974E-6 : f32
    %156 = vector.broadcast %cst_64 : f32 to vector<16x1xf32>
    %157 = arith.addf %155, %156 : vector<16x1xf32>
    %158 = math.rsqrt %157 : vector<16x1xf32>
    %159 = vector.broadcast %158 : vector<16x1xf32> to vector<16x32xf32>
    %160 = arith.mulf %150, %159 : vector<16x32xf32>
    %161 = vector.broadcast %142 : vector<1x32xf32> to vector<16x32xf32>
    %162 = arith.mulf %160, %161 : vector<16x32xf32>
    %163 = vector.broadcast %143 : vector<1x32xf32> to vector<16x32xf32>
    %164 = arith.addf %162, %163 : vector<16x32xf32>
    %c0_65 = arith.constant 0 : index
    %c0_66 = arith.constant 0 : index
    %165 = vector.load %arg5[%c0_65, %c0_66] : memref<16x32xf32, #tpu.memory_space<vmem>>, vector<16x32xf32>
    tpu.vector_store %arg5[%c0_65, %c0_66], %164 {strides = array<i32>} : memref<16x32xf32, #tpu.memory_space<vmem>>, vector<16x32xf32>,
    return
  }
  func.func @transform_0(%arg0: i32) -> (i32, i32) {
    %c0_i32 = arith.constant 0 : i32
    %c0_i32_0 = arith.constant 0 : i32
    %c0_i32_1 = arith.constant 0 : i32
    return %c0_i32, %c0_i32_0 : i32, i32
  }
  func.func @transform_1(%arg0: i32) -> (i32, i32) {
    %c0_i32 = arith.constant 0 : i32
    %c0_i32_0 = arith.constant 0 : i32
    %c0_i32_1 = arith.constant 0 : i32
    return %c0_i32, %c0_i32_0 : i32, i32
  }
  func.func @transform_2(%arg0: i32) -> (i32, i32) {
    %c0_i32 = arith.constant 0 : i32
    %c0_i32_0 = arith.constant 0 : i32
    %c0_i32_1 = arith.constant 0 : i32
    return %c0_i32, %c0_i32_0 : i32, i32
  }
  func.func @transform_3(%arg0: i32) -> (i32, i32) {
    %c0_i32 = arith.constant 0 : i32
    %c0_i32_0 = arith.constant 0 : i32
    %c0_i32_1 = arith.constant 0 : i32
    return %c0_i32, %c0_i32_0 : i32, i32
  }
  func.func @transform_4(%arg0: i32) -> (i32, i32) {
    %c0_i32 = arith.constant 0 : i32
    %c0_i32_0 = arith.constant 0 : i32
    %c0_i32_1 = arith.constant 0 : i32
    return %c0_i32, %c0_i32_0 : i32, i32
  }
}

</mosaic_0001>

<llo_original>
// kernel: tpu_custom_call.1
$region0: #{tpu_custom_call.1}
  #allocation0 [shape = 'u32[]', space=smem, size = 0x4, offset = 0x4, fixed_abs, tag = 'smem constant byte address 0x4 - core index']
  #allocation1 [shape = 'u32[144,128]{1,0:T(1,128)}', space=vmem, size = 0x12000, scoped, tag = 'internal scratch']
  %s0 = inlined_call_operand.hbm [shape: f32[16,32], index: 0, kind: input, shape index: {}]
  %s1 = inlined_call_operand.hbm [shape: f32[16,32], index: 1, kind: input, shape index: {}]
  %s2 = inlined_call_operand.hbm [shape: f32[16,32], index: 2, kind: input, shape index: {}]
  %s3 = inlined_call_operand.hbm [shape: f32[240,128], index: 3, kind: input, shape index: {}]
  %s4 = inlined_call_operand.hbm [shape: f32[16,32], index: 4, kind: output, shape index: {}]
  %s5 = sld [smem:[#allocation0]]
  $region42: #{tpu_custom_call.1} parent=0
    _
  %s7 = ssub.s32 1, %s5
  %s8 = scalar_select 0, %s7, %s5
  $region1: #{tpu_custom_call.1} parent=0
    #allocation2 [shape = 'u8[8192]{0}', space=vmem, size = 0x2000, scoped, tag = 'input window, operand 0, single buffered']
    #allocation3 [shape = 's32[1]{0}', space=sflag, size = 0x4, scoped, tag = 'scoped memory for tpu_custom_call.1']
    #allocation4 [shape = 's32[1]{0}', space=sflag, size = 0x4, scoped, tag = 'scoped memory for tpu_custom_call.1']
    #allocation5 [shape = 'u8[8192]{0}', space=vmem, size = 0x2000, scoped, tag = 'input window, operand 1, single buffered']
    #allocation6 [shape = 's32[1]{0}', space=sflag, size = 0x4, scoped, tag = 'scoped memory for tpu_custom_call.1']
    #allocation7 [shape = 'u8[8192]{0}', space=vmem, size = 0x2000, scoped, tag = 'input window, operand 2, single buffered']
    #allocation8 [shape = 'u8[122880]{0}', space=vmem, size = 0x1e000, scoped, tag = 'input window, operand 3, single buffered']
    #allocation9 [shape = 's32[1]{0}', space=sflag, size = 0x4, scoped, tag = 'scoped memory for tpu_custom_call.1']
    #allocation10 [shape = 'u8[8192]{0}', space=vmem, size = 0x2000, scoped, tag = 'output window, operand 0, single buffered']
    %9 = vsyncpa [#allocation3], 0
    %10 = vsyncpa [#allocation6], 0
    %11 = vsyncpa [#allocation9], 0
    %12 = vsyncpa [#allocation4], 0
    // Predicated region
    $region2: #{tpu_custom_call.1} parent=1 // pred_check
      _
    $region3: #{tpu_custom_call.1} parent=1 // pred_check_branch
      %14 = sbr.rel (0) target = $region5
    $region4: #{tpu_custom_call.1} parent=1 // pred_region
      %s16 = ssub.s32 256, 256
      %17 = vsyncadd [#allocation3], %s16
      %s18 = sshll.u32 [#allocation2], 4
      %s19 = int_to_ptr.vmem [resolvable:$true] %s18
      %24 = dma.hbm_to_vmem [thread:$0]  %s0, 256, %s19, [#allocation3], 128, 128, 8
    $region5: #{tpu_custom_call.1} parent=1 // pred_fallthru
      _
    // Predicated region
    $region6: #{tpu_custom_call.1} parent=1 // pred_check
      _
    $region7: #{tpu_custom_call.1} parent=1 // pred_check_branch
      %26 = sbr.rel (0) target = $region9
    $region8: #{tpu_custom_call.1} parent=1 // pred_region
      %s28 = ssub.s32 256, 256
      %29 = vsyncadd [#allocation6], %s28
      %s30 = sshll.u32 [#allocation5], 4
      %s31 = int_to_ptr.vmem [resolvable:$true] %s30
      %36 = dma.hbm_to_vmem [thread:$0]  %s1, 256, %s31, [#allocation6], 128, 128, 8
    $region9: #{tpu_custom_call.1} parent=1 // pred_fallthru
      _
    // Predicated region
    $region10: #{tpu_custom_call.1} parent=1 // pred_check
      _
    $region11: #{tpu_custom_call.1} parent=1 // pred_check_branch
      %38 = sbr.rel (0) target = $region13
    $region12: #{tpu_custom_call.1} parent=1 // pred_region
      %s40 = ssub.s32 256, 256
      %41 = vsyncadd [#allocation6], %s40
      %s42 = sshll.u32 [#allocation7], 4
      %s43 = int_to_ptr.vmem [resolvable:$true] %s42
      %48 = dma.hbm_to_vmem [thread:$0]  %s2, 256, %s43, [#allocation6], 128, 128, 8
    $region13: #{tpu_custom_call.1} parent=1 // pred_fallthru
      _
    // Predicated region
    $region14: #{tpu_custom_call.1} parent=1 // pred_check
      _
    $region15: #{tpu_custom_call.1} parent=1 // pred_check_branch
      %50 = sbr.rel (0) target = $region17
    $region16: #{tpu_custom_call.1} parent=1 // pred_region
      %s52 = ssub.s32 3840, 3840
      %53 = vsyncadd [#allocation9], %s52
      %s54 = sshll.u32 [#allocation8], 4
      %s55 = int_to_ptr.vmem [resolvable:$true] %s54
      %60 = dma.hbm_to_vmem [thread:$0]  %s3, 3840, %s55, [#allocation9], 128, 128, 8
    $region17: #{tpu_custom_call.1} parent=1 // pred_fallthru
      _
    // Predicated region
    $region18: #{tpu_custom_call.1} parent=1 // pred_check
      _
    $region19: #{tpu_custom_call.1} parent=1 // pred_check_branch
      %62 = sbr.rel (0) target = $region21
    $region20: #{tpu_custom_call.1} parent=1 // pred_region
      %63 = dma.done [#allocation3], 256
    $region21: #{tpu_custom_call.1} parent=1 // pred_fallthru
      _
    // Predicated region
    $region22: #{tpu_custom_call.1} parent=1 // pred_check
      _
    $region23: #{tpu_custom_call.1} parent=1 // pred_check_branch
      %65 = sbr.rel (0) target = $region25
    $region24: #{tpu_custom_call.1} parent=1 // pred_region
      %66 = dma.done [#allocation6], 256
    $region25: #{tpu_custom_call.1} parent=1 // pred_fallthru
      _
    // Predicated region
    $region26: #{tpu_custom_call.1} parent=1 // pred_check
      _
    $region27: #{tpu_custom_call.1} parent=1 // pred_check_branch
      %68 = sbr.rel (0) target = $region29
    $region28: #{tpu_custom_call.1} parent=1 // pred_region
      %69 = dma.done [#allocation6], 256
    $region29: #{tpu_custom_call.1} parent=1 // pred_fallthru
      _
    // Predicated region
    $region30: #{tpu_custom_call.1} parent=1 // pred_check
      _
    $region31: #{tpu_custom_call.1} parent=1 // pred_check_branch
      %71 = sbr.rel (0) target = $region33
    $region32: #{tpu_custom_call.1} parent=1 // pred_region
      %72 = dma.done [#allocation9], 3840
    $region33: #{tpu_custom_call.1} parent=1 // pred_fallthru
      _
    %v73 = vld [vmem:[#allocation2] sm:$0xff]
    %v74 = vld [vmem:[#allocation2 + $0x8] sm:$0xff]
    %v75 = vld [vmem:[#allocation5] sm:$0xff]
    %v76 = vld [vmem:[#allocation5 + $0x8] sm:$0xff]
    %v77 = vld [vmem:[#allocation7] sm:$0xff]
    %v78 = vld [vmem:[#allocation7 + $0x8] sm:$0xff]
    %v79 = vld [vmem:[#allocation8] sm:$0xff]
    %v80 = vld [vmem:[#allocation8 + $0x8] sm:$0xff]
    %v81 = vld [vmem:[#allocation8 + $0x10] sm:$0xff]
    %v82 = vld [vmem:[#allocation8 + $0x18] sm:$0xff]
    %v83 = vld [vmem:[#allocation8 + $0x20] sm:$0xff]
    %v84 = vld [vmem:[#allocation8 + $0x28] sm:$0xff]
    %v85 = vld [vmem:[#allocation8 + $0x30] sm:$0xff]
    %v86 = vld [vmem:[#allocation8 + $0x38] sm:$0xff]
    %v87 = vld [vmem:[#allocation8 + $0x40] sm:$0xff]
    %v88 = vld [vmem:[#allocation8 + $0x48] sm:$0xff]
    %v89 = vld [vmem:[#allocation8 + $0x50] sm:$0xff]
    %v90 = vld [vmem:[#allocation8 + $0x58] sm:$0xff]
    %v91 = vld [vmem:[#allocation8 + $0xe0] sm:$0x1]
    %v92 = vld [vmem:[#allocation8 + $0xe1] sm:$0x1]
    %v93 = vld [vmem:[#allocation8 + $0xe2] sm:$0x1]
    %v94 = vlaneseq
    %v95 = vshrl.u32 %v94, 7
    %v96 = vsub.s32 0, %v95
    %v97 = vrot.slane %v91, %v96
    %vm98 = vcmask 261120
    %v100 = vsel %vm98, %v73, 0
    %v103 = vsel %vm98, %v74, 0
    %105 = vmatprep.subr.mxu0 0.0
    %106 = vmatpush1.msra.mxu0 %v79
    %107 = vmatprep.subr.mxu0 0.0
    %108 = vmatpush1.msra.mxu0 %v80
    %109 = vmatprep.subr.mxu0 0.0
    %110 = vmatpush1.msra.mxu0 %v81
    %111 = vmatprep.subr.mxu0 0.0
    %112 = vmatpush1.msra.mxu0 %v82
    %113 = vmatprep.subr.mxu0 0.0
    %114 = vmatpush1.msra.mxu0 0.0
    %115 = vmatprep.subr.mxu0 0.0
    %116 = vmatpush1.msra.mxu0 0.0
    %117 = vmatprep.subr.mxu0 0.0
    %118 = vmatpush1.msra.mxu0 0.0
    %119 = vmatprep.subr.mxu0 0.0
    %120 = vmatpush1.msra.mxu0 0.0
    %121 = vmatprep.subr.mxu0 0.0
    %122 = vmatpush1.msra.mxu0 0.0
    %123 = vmatprep.subr.mxu0 0.0
    %124 = vmatpush1.msra.mxu0 0.0
    %125 = vmatprep.subr.mxu0 0.0
    %126 = vmatpush1.msra.mxu0 0.0
    %127 = vmatprep.subr.mxu0 0.0
    %128 = vmatpush1.msra.mxu0 0.0
    %129 = vmatprep.subr.mxu0 0.0
    %130 = vmatpush1.msra.mxu0 0.0
    %131 = vmatprep.subr.mxu0 0.0
    %132 = vmatpush1.msra.mxu0 0.0
    %133 = vmatprep.subr.mxu0 0.0
    %134 = vmatpush1.msra.mxu0 0.0
    %135 = vmatprep.subr.mxu0 0.0
    %136 = vmatpush1.msra.mxu0 0.0
    %137 = vmatprep.subr.mxu0 0.0
    %138 = vmatpush1.msra.mxu0 0.0
    %139 = vmatprep.subr.mxu0 0.0
    %140 = vmatpush1.msra.mxu0 0.0
    %141 = vmatprep.subr.mxu0 0.0
    %142 = vmatpush1.msra.mxu0 0.0
    %143 = vmatprep.subr.mxu0 0.0
    %144 = vmatpush1.msra.mxu0 0.0
    %145 = vmatprep.subr.mxu0 0.0
    %146 = vmatpush1.msra.mxu0 0.0
    %147 = vmatprep.subr.mxu0 0.0
    %148 = vmatpush1.msra.mxu0 0.0
    %149 = vmatprep.subr.mxu0 0.0
    %150 = vmatpush1.msra.mxu0 0.0
    %151 = vmatprep.subr.mxu0 0.0
    %152 = vmatpush1.msra.mxu0 0.0
    %153 = vmatprep.subr.mxu0 0.0
    %154 = vmatpush1.msra.mxu0 0.0
    %155 = vmatprep.subr.mxu0 0.0
    %156 = vmatpush1.msra.mxu0 0.0
    %157 = vmatprep.subr.mxu0 0.0
    %158 = vmatpush1.msra.mxu0 0.0
    %159 = vmatprep.subr.mxu0 0.0
    %160 = vmatpush1.msra.mxu0 0.0
    %161 = vmatprep.subr.mxu0 0.0
    %162 = vmatpush1.msra.mxu0 0.0
    %163 = vmatprep.subr.mxu0 0.0
    %164 = vmatpush1.msra.mxu0 0.0
    %165 = vmatprep.subr.mxu0 0.0
    %166 = vmatpush1.msra.mxu0 0.0
    %167 = vmatprep.subr.mxu0 0.0
    %168 = vmatpush1.msra.mxu0 0.0
    %169 = vmatprep.mubr.f32.mxu0 0.0
    %170 = vmatmul.mubr.f32.gmra.mrb[0].mxu0 %v100
    %v171 = vpop.f32.mrb[0].mxu0
    %v172 = vadd.f32 %v97, %v171
    %v173 = vpop.f32.mrb[0].mxu0
    %174 = vmatprep.mubr.f32.mxu0 0.0
    %175 = vmatmul.mubr.f32.gmra.mrb[0].mxu0 %v103
    %v176 = vpop.f32.mrb[0].mxu0
    %v177 = vadd.f32 %v97, %v176
    %v178 = vpop.f32.mrb[0].mxu0
    %179 = vdwg.mxu0
    %v180 = vlaneseq
    %v181 = vshrl.u32 %v180, 7
    %v182 = vsub.s32 0, %v181
    %v183 = vrot.slane %v92, %v182
    %v185 = vsel %vm98, %v75, 0
    %v188 = vsel %vm98, %v76, 0
    %190 = vmatprep.subr.mxu0 0.0
    %191 = vmatpush1.msra.mxu0 %v83
    %192 = vmatprep.subr.mxu0 0.0
    %193 = vmatpush1.msra.mxu0 %v84
    %194 = vmatprep.subr.mxu0 0.0
    %195 = vmatpush1.msra.mxu0 %v85
    %196 = vmatprep.subr.mxu0 0.0
    %197 = vmatpush1.msra.mxu0 %v86
    %198 = vmatprep.subr.mxu0 0.0
    %199 = vmatpush1.msra.mxu0 0.0
    %200 = vmatprep.subr.mxu0 0.0
    %201 = vmatpush1.msra.mxu0 0.0
    %202 = vmatprep.subr.mxu0 0.0
    %203 = vmatpush1.msra.mxu0 0.0
    %204 = vmatprep.subr.mxu0 0.0
    %205 = vmatpush1.msra.mxu0 0.0
    %206 = vmatprep.subr.mxu0 0.0
    %207 = vmatpush1.msra.mxu0 0.0
    %208 = vmatprep.subr.mxu0 0.0
    %209 = vmatpush1.msra.mxu0 0.0
    %210 = vmatprep.subr.mxu0 0.0
    %211 = vmatpush1.msra.mxu0 0.0
    %212 = vmatprep.subr.mxu0 0.0
    %213 = vmatpush1.msra.mxu0 0.0
    %214 = vmatprep.subr.mxu0 0.0
    %215 = vmatpush1.msra.mxu0 0.0
    %216 = vmatprep.subr.mxu0 0.0
    %217 = vmatpush1.msra.mxu0 0.0
    %218 = vmatprep.subr.mxu0 0.0
    %219 = vmatpush1.msra.mxu0 0.0
    %220 = vmatprep.subr.mxu0 0.0
    %221 = vmatpush1.msra.mxu0 0.0
    %222 = vmatprep.subr.mxu0 0.0
    %223 = vmatpush1.msra.mxu0 0.0
    %224 = vmatprep.subr.mxu0 0.0
    %225 = vmatpush1.msra.mxu0 0.0
    %226 = vmatprep.subr.mxu0 0.0
    %227 = vmatpush1.msra.mxu0 0.0
    %228 = vmatprep.subr.mxu0 0.0
    %229 = vmatpush1.msra.mxu0 0.0
    %230 = vmatprep.subr.mxu0 0.0
    %231 = vmatpush1.msra.mxu0 0.0
    %232 = vmatprep.subr.mxu0 0.0
    %233 = vmatpush1.msra.mxu0 0.0
    %234 = vmatprep.subr.mxu0 0.0
    %235 = vmatpush1.msra.mxu0 0.0
    %236 = vmatprep.subr.mxu0 0.0
    %237 = vmatpush1.msra.mxu0 0.0
    %238 = vmatprep.subr.mxu0 0.0
    %239 = vmatpush1.msra.mxu0 0.0
    %240 = vmatprep.subr.mxu0 0.0
    %241 = vmatpush1.msra.mxu0 0.0
    %242 = vmatprep.subr.mxu0 0.0
    %243 = vmatpush1.msra.mxu0 0.0
    %244 = vmatprep.subr.mxu0 0.0
    %245 = vmatpush1.msra.mxu0 0.0
    %246 = vmatprep.subr.mxu0 0.0
    %247 = vmatpush1.msra.mxu0 0.0
    %248 = vmatprep.subr.mxu0 0.0
    %249 = vmatpush1.msra.mxu0 0.0
    %250 = vmatprep.subr.mxu0 0.0
    %251 = vmatpush1.msra.mxu0 0.0
    %252 = vmatprep.subr.mxu0 0.0
    %253 = vmatpush1.msra.mxu0 0.0
    %254 = vmatprep.mubr.f32.mxu0 0.0
    %255 = vmatmul.mubr.f32.gmra.mrb[0].mxu0 %v185
    %v256 = vpop.f32.mrb[0].mxu0
    %v257 = vadd.f32 %v183, %v256
    %v258 = vpop.f32.mrb[0].mxu0
    %259 = vmatprep.mubr.f32.mxu0 0.0
    %260 = vmatmul.mubr.f32.gmra.mrb[0].mxu0 %v188
    %v261 = vpop.f32.mrb[0].mxu0
    %v262 = vadd.f32 %v183, %v261
    %v263 = vpop.f32.mrb[0].mxu0
    %264 = vdwg.mxu0
    %v265 = vlaneseq
    %v266 = vshrl.u32 %v265, 7
    %v267 = vsub.s32 0, %v266
    %v268 = vrot.slane %v93, %v267
    %v270 = vsel %vm98, %v77, 0
    %v273 = vsel %vm98, %v78, 0
    %275 = vmatprep.subr.mxu0 0.0
    %276 = vmatpush1.msra.mxu0 %v87
    %277 = vmatprep.subr.mxu0 0.0
    %278 = vmatpush1.msra.mxu0 %v88
    %279 = vmatprep.subr.mxu0 0.0
    %280 = vmatpush1.msra.mxu0 %v89
    %281 = vmatprep.subr.mxu0 0.0
    %282 = vmatpush1.msra.mxu0 %v90
    %283 = vmatprep.subr.mxu0 0.0
    %284 = vmatpush1.msra.mxu0 0.0
    %285 = vmatprep.subr.mxu0 0.0
    %286 = vmatpush1.msra.mxu0 0.0
    %287 = vmatprep.subr.mxu0 0.0
    %288 = vmatpush1.msra.mxu0 0.0
    %289 = vmatprep.subr.mxu0 0.0
    %290 = vmatpush1.msra.mxu0 0.0
    %291 = vmatprep.subr.mxu0 0.0
    %292 = vmatpush1.msra.mxu0 0.0
    %293 = vmatprep.subr.mxu0 0.0
    %294 = vmatpush1.msra.mxu0 0.0
    %295 = vmatprep.subr.mxu0 0.0
    %296 = vmatpush1.msra.mxu0 0.0
    %297 = vmatprep.subr.mxu0 0.0
    %298 = vmatpush1.msra.mxu0 0.0
    %299 = vmatprep.subr.mxu0 0.0
    %300 = vmatpush1.msra.mxu0 0.0
    %301 = vmatprep.subr.mxu0 0.0
    %302 = vmatpush1.msra.mxu0 0.0
    %303 = vmatprep.subr.mxu0 0.0
    %304 = vmatpush1.msra.mxu0 0.0
    %305 = vmatprep.subr.mxu0 0.0
    %306 = vmatpush1.msra.mxu0 0.0
    %307 = vmatprep.subr.mxu0 0.0
    %308 = vmatpush1.msra.mxu0 0.0
    %309 = vmatprep.subr.mxu0 0.0
    %310 = vmatpush1.msra.mxu0 0.0
    %311 = vmatprep.subr.mxu0 0.0
    %312 = vmatpush1.msra.mxu0 0.0
    %313 = vmatprep.subr.mxu0 0.0
    %314 = vmatpush1.msra.mxu0 0.0
    %315 = vmatprep.subr.mxu0 0.0
    %316 = vmatpush1.msra.mxu0 0.0
    %317 = vmatprep.subr.mxu0 0.0
    %318 = vmatpush1.msra.mxu0 0.0
    %319 = vmatprep.subr.mxu0 0.0
    %320 = vmatpush1.msra.mxu0 0.0
    %321 = vmatprep.subr.mxu0 0.0
    %322 = vmatpush1.msra.mxu0 0.0
    %323 = vmatprep.subr.mxu0 0.0
    %324 = vmatpush1.msra.mxu0 0.0
    %325 = vmatprep.subr.mxu0 0.0
    %326 = vmatpush1.msra.mxu0 0.0
    %327 = vmatprep.subr.mxu0 0.0
    %328 = vmatpush1.msra.mxu0 0.0
    %329 = vmatprep.subr.mxu0 0.0
    %330 = vmatpush1.msra.mxu0 0.0
    %331 = vmatprep.subr.mxu0 0.0
    %332 = vmatpush1.msra.mxu0 0.0
    %333 = vmatprep.subr.mxu0 0.0
    %334 = vmatpush1.msra.mxu0 0.0
    %335 = vmatprep.subr.mxu0 0.0
    %336 = vmatpush1.msra.mxu0 0.0
    %337 = vmatprep.subr.mxu0 0.0
    %338 = vmatpush1.msra.mxu0 0.0
    %339 = vmatprep.mubr.f32.mxu0 0.0
    %340 = vmatmul.mubr.f32.gmra.mrb[0].mxu0 %v270
    %v341 = vpop.f32.mrb[0].mxu0
    %v342 = vadd.f32 %v268, %v341
    %v343 = vpop.f32.mrb[0].mxu0
    %344 = vmatprep.mubr.f32.mxu0 0.0
    %345 = vmatmul.mubr.f32.gmra.mrb[0].mxu0 %v273
    %v346 = vpop.f32.mrb[0].mxu0
    %v347 = vadd.f32 %v268, %v346
    %v348 = vpop.f32.mrb[0].mxu0
    %349 = vdwg.mxu0
    %v350 = vld [vmem:[#allocation8 + $0x60] sm:$0xff]
    %v351 = vld [vmem:[#allocation8 + $0x68] sm:$0xff]
    %v352 = vld [vmem:[#allocation8 + $0x70] sm:$0xff]
    %v353 = vld [vmem:[#allocation8 + $0x78] sm:$0xff]
    %v354 = vld [vmem:[#allocation8 + $0xe3] sm:$0x1]
    %vm355 = vcmask 64512
    %v357 = vsel %vm355, %v172, 0
    %v360 = vsel %vm355, %v257, 0
    %362 = vmatprep.subr.mxu0 0.0
    %363 = vmatpush1.xpose.msra.mxu0 %v360
    %364 = vmatprep.subr.mxu0 0.0
    %365 = vmatpush1.xpose.msra.mxu0 0.0
    %366 = vmatprep.subr.mxu0 0.0
    %367 = vmatpush1.xpose.msra.mxu0 0.0
    %368 = vmatprep.subr.mxu0 0.0
    %369 = vmatpush1.xpose.msra.mxu0 0.0
    %370 = vmatprep.subr.mxu0 0.0
    %371 = vmatpush1.xpose.msra.mxu0 0.0
    %372 = vmatprep.subr.mxu0 0.0
    %373 = vmatpush1.xpose.msra.mxu0 0.0
    %374 = vmatprep.subr.mxu0 0.0
    %375 = vmatpush1.xpose.msra.mxu0 0.0
    %376 = vmatprep.subr.mxu0 0.0
    %377 = vmatpush1.xpose.msra.mxu0 0.0
    %378 = vmatprep.subr.mxu0 0.0
    %379 = vmatpush1.xpose.msra.mxu0 0.0
    %380 = vmatprep.subr.mxu0 0.0
    %381 = vmatpush1.xpose.msra.mxu0 0.0
    %382 = vmatprep.subr.mxu0 0.0
    %383 = vmatpush1.xpose.msra.mxu0 0.0
    %384 = vmatprep.subr.mxu0 0.0
    %385 = vmatpush1.xpose.msra.mxu0 0.0
    %386 = vmatprep.subr.mxu0 0.0
    %387 = vmatpush1.xpose.msra.mxu0 0.0
    %388 = vmatprep.subr.mxu0 0.0
    %389 = vmatpush1.xpose.msra.mxu0 0.0
    %390 = vmatprep.subr.mxu0 0.0
    %391 = vmatpush1.xpose.msra.mxu0 0.0
    %392 = vmatprep.subr.mxu0 0.0
    %393 = vmatpush1.xpose.msra.mxu0 0.0
    %394 = vmatprep.subr.mxu0 0.0
    %395 = vmatpush1.xpose.msra.mxu0 0.0
    %396 = vmatprep.subr.mxu0 0.0
    %397 = vmatpush1.xpose.msra.mxu0 0.0
    %398 = vmatprep.subr.mxu0 0.0
    %399 = vmatpush1.xpose.msra.mxu0 0.0
    %400 = vmatprep.subr.mxu0 0.0
    %401 = vmatpush1.xpose.msra.mxu0 0.0
    %402 = vmatprep.subr.mxu0 0.0
    %403 = vmatpush1.xpose.msra.mxu0 0.0
    %404 = vmatprep.subr.mxu0 0.0
    %405 = vmatpush1.xpose.msra.mxu0 0.0
    %406 = vmatprep.subr.mxu0 0.0
    %407 = vmatpush1.xpose.msra.mxu0 0.0
    %408 = vmatprep.subr.mxu0 0.0
    %409 = vmatpush1.xpose.msra.mxu0 0.0
    %410 = vmatprep.subr.mxu0 0.0
    %411 = vmatpush1.xpose.msra.mxu0 0.0
    %412 = vmatprep.subr.mxu0 0.0
    %413 = vmatpush1.xpose.msra.mxu0 0.0
    %414 = vmatprep.subr.mxu0 0.0
    %415 = vmatpush1.xpose.msra.mxu0 0.0
    %416 = vmatprep.subr.mxu0 0.0
    %417 = vmatpush1.xpose.msra.mxu0 0.0
    %418 = vmatprep.subr.mxu0 0.0
    %419 = vmatpush1.xpose.msra.mxu0 0.0
    %420 = vmatprep.subr.mxu0 0.0
    %421 = vmatpush1.xpose.msra.mxu0 0.0
    %422 = vmatprep.subr.mxu0 0.0
    %423 = vmatpush1.xpose.msra.mxu0 0.0
    %424 = vmatprep.subr.mxu0 0.0
    %425 = vmatpush1.xpose.msra.mxu0 0.0
    %426 = vmatprep.mubr.f32.mxu0 0.0
    %427 = vmatmul.mubr.f32.gmra.mrb[0].mxu0 %v357
    %v428 = vpop.f32.mrb[0].mxu0
    %v429 = vadd.f32 0.0, %v428
    %v430 = vpop.f32.mrb[0].mxu0
    %431 = vdwg.mxu0
    %432 = vrot.lane.b32.xlu0 %v172, 120
    %v433 = vpop.permute.xlu0 %432
    %434 = vrot.lane.b32.xlu0 %v257, 120
    %v435 = vpop.permute.xlu0 %434
    %v436 = vsel %vm355, %v433, 0
    %v438 = vsel %vm355, %v435, 0
    %440 = vmatprep.subr.mxu0 0.0
    %441 = vmatpush1.xpose.msra.mxu0 %v438
    %442 = vmatprep.subr.mxu0 0.0
    %443 = vmatpush1.xpose.msra.mxu0 0.0
    %444 = vmatprep.subr.mxu0 0.0
    %445 = vmatpush1.xpose.msra.mxu0 0.0
    %446 = vmatprep.subr.mxu0 0.0
    %447 = vmatpush1.xpose.msra.mxu0 0.0
    %448 = vmatprep.subr.mxu0 0.0
    %449 = vmatpush1.xpose.msra.mxu0 0.0
    %450 = vmatprep.subr.mxu0 0.0
    %451 = vmatpush1.xpose.msra.mxu0 0.0
    %452 = vmatprep.subr.mxu0 0.0
    %453 = vmatpush1.xpose.msra.mxu0 0.0
    %454 = vmatprep.subr.mxu0 0.0
    %455 = vmatpush1.xpose.msra.mxu0 0.0
    %456 = vmatprep.subr.mxu0 0.0
    %457 = vmatpush1.xpose.msra.mxu0 0.0
    %458 = vmatprep.subr.mxu0 0.0
    %459 = vmatpush1.xpose.msra.mxu0 0.0
    %460 = vmatprep.subr.mxu0 0.0
    %461 = vmatpush1.xpose.msra.mxu0 0.0
    %462 = vmatprep.subr.mxu0 0.0
    %463 = vmatpush1.xpose.msra.mxu0 0.0
    %464 = vmatprep.subr.mxu0 0.0
    %465 = vmatpush1.xpose.msra.mxu0 0.0
    %466 = vmatprep.subr.mxu0 0.0
    %467 = vmatpush1.xpose.msra.mxu0 0.0
    %468 = vmatprep.subr.mxu0 0.0
    %469 = vmatpush1.xpose.msra.mxu0 0.0
    %470 = vmatprep.subr.mxu0 0.0
    %471 = vmatpush1.xpose.msra.mxu0 0.0
    %472 = vmatprep.subr.mxu0 0.0
    %473 = vmatpush1.xpose.msra.mxu0 0.0
    %474 = vmatprep.subr.mxu0 0.0
    %475 = vmatpush1.xpose.msra.mxu0 0.0
    %476 = vmatprep.subr.mxu0 0.0
    %477 = vmatpush1.xpose.msra.mxu0 0.0
    %478 = vmatprep.subr.mxu0 0.0
    %479 = vmatpush1.xpose.msra.mxu0 0.0
    %480 = vmatprep.subr.mxu0 0.0
    %481 = vmatpush1.xpose.msra.mxu0 0.0
    %482 = vmatprep.subr.mxu0 0.0
    %483 = vmatpush1.xpose.msra.mxu0 0.0
    %484 = vmatprep.subr.mxu0 0.0
    %485 = vmatpush1.xpose.msra.mxu0 0.0
    %486 = vmatprep.subr.mxu0 0.0
    %487 = vmatpush1.xpose.msra.mxu0 0.0
    %488 = vmatprep.subr.mxu0 0.0
    %489 = vmatpush1.xpose.msra.mxu0 0.0
    %490 = vmatprep.subr.mxu0 0.0
    %491 = vmatpush1.xpose.msra.mxu0 0.0
    %492 = vmatprep.subr.mxu0 0.0
    %493 = vmatpush1.xpose.msra.mxu0 0.0
    %494 = vmatprep.subr.mxu0 0.0
    %495 = vmatpush1.xpose.msra.mxu0 0.0
    %496 = vmatprep.subr.mxu0 0.0
    %497 = vmatpush1.xpose.msra.mxu0 0.0
    %498 = vmatprep.subr.mxu0 0.0
    %499 = vmatpush1.xpose.msra.mxu0 0.0
    %500 = vmatprep.subr.mxu0 0.0
    %501 = vmatpush1.xpose.msra.mxu0 0.0
    %502 = vmatprep.subr.mxu0 0.0
    %503 = vmatpush1.xpose.msra.mxu0 0.0
    %504 = vmatprep.mubr.f32.mxu0 0.0
    %505 = vmatmul.mubr.f32.gmra.mrb[0].mxu0 %v436
    %v506 = vpop.f32.mrb[0].mxu0
    %v507 = vadd.f32 0.0, %v506
    %v508 = vpop.f32.mrb[0].mxu0
    %509 = vdwg.mxu0
    %510 = vrot.lane.b32.xlu0 %v172, 112
    %v511 = vpop.permute.xlu0 %510
    %512 = vrot.lane.b32.xlu0 %v257, 112
    %v513 = vpop.permute.xlu0 %512
    %v514 = vsel %vm355, %v511, 0
    %v516 = vsel %vm355, %v513, 0
    %518 = vmatprep.subr.mxu0 0.0
    %519 = vmatpush1.xpose.msra.mxu0 %v516
    %520 = vmatprep.subr.mxu0 0.0
    %521 = vmatpush1.xpose.msra.mxu0 0.0
    %522 = vmatprep.subr.mxu0 0.0
    %523 = vmatpush1.xpose.msra.mxu0 0.0
    %524 = vmatprep.subr.mxu0 0.0
    %525 = vmatpush1.xpose.msra.mxu0 0.0
    %526 = vmatprep.subr.mxu0 0.0
    %527 = vmatpush1.xpose.msra.mxu0 0.0
    %528 = vmatprep.subr.mxu0 0.0
    %529 = vmatpush1.xpose.msra.mxu0 0.0
    %530 = vmatprep.subr.mxu0 0.0
    %531 = vmatpush1.xpose.msra.mxu0 0.0
    %532 = vmatprep.subr.mxu0 0.0
    %533 = vmatpush1.xpose.msra.mxu0 0.0
    %534 = vmatprep.subr.mxu0 0.0
    %535 = vmatpush1.xpose.msra.mxu0 0.0
    %536 = vmatprep.subr.mxu0 0.0
    %537 = vmatpush1.xpose.msra.mxu0 0.0
    %538 = vmatprep.subr.mxu0 0.0
    %539 = vmatpush1.xpose.msra.mxu0 0.0
    %540 = vmatprep.subr.mxu0 0.0
    %541 = vmatpush1.xpose.msra.mxu0 0.0
    %542 = vmatprep.subr.mxu0 0.0
    %543 = vmatpush1.xpose.msra.mxu0 0.0
    %544 = vmatprep.subr.mxu0 0.0
    %545 = vmatpush1.xpose.msra.mxu0 0.0
    %546 = vmatprep.subr.mxu0 0.0
    %547 = vmatpush1.xpose.msra.mxu0 0.0
    %548 = vmatprep.subr.mxu0 0.0
    %549 = vmatpush1.xpose.msra.mxu0 0.0
    %550 = vmatprep.subr.mxu0 0.0
    %551 = vmatpush1.xpose.msra.mxu0 0.0
    %552 = vmatprep.subr.mxu0 0.0
    %553 = vmatpush1.xpose.msra.mxu0 0.0
    %554 = vmatprep.subr.mxu0 0.0
    %555 = vmatpush1.xpose.msra.mxu0 0.0
    %556 = vmatprep.subr.mxu0 0.0
    %557 = vmatpush1.xpose.msra.mxu0 0.0
    %558 = vmatprep.subr.mxu0 0.0
    %559 = vmatpush1.xpose.msra.mxu0 0.0
    %560 = vmatprep.subr.mxu0 0.0
    %561 = vmatpush1.xpose.msra.mxu0 0.0
    %562 = vmatprep.subr.mxu0 0.0
    %563 = vmatpush1.xpose.msra.mxu0 0.0
    %564 = vmatprep.subr.mxu0 0.0
    %565 = vmatpush1.xpose.msra.mxu0 0.0
    %566 = vmatprep.subr.mxu0 0.0
    %567 = vmatpush1.xpose.msra.mxu0 0.0
    %568 = vmatprep.subr.mxu0 0.0
    %569 = vmatpush1.xpose.msra.mxu0 0.0
    %570 = vmatprep.subr.mxu0 0.0
    %571 = vmatpush1.xpose.msra.mxu0 0.0
    %572 = vmatprep.subr.mxu0 0.0
    %573 = vmatpush1.xpose.msra.mxu0 0.0
    %574 = vmatprep.subr.mxu0 0.0
    %575 = vmatpush1.xpose.msra.mxu0 0.0
    %576 = vmatprep.subr.mxu0 0.0
    %577 = vmatpush1.xpose.msra.mxu0 0.0
    %578 = vmatprep.subr.mxu0 0.0
    %579 = vmatpush1.xpose.msra.mxu0 0.0
    %580 = vmatprep.subr.mxu0 0.0
    %581 = vmatpush1.xpose.msra.mxu0 0.0
    %582 = vmatprep.mubr.f32.mxu0 0.0
    %583 = vmatmul.mubr.f32.gmra.mrb[0].mxu0 %v514
    %v584 = vpop.f32.mrb[0].mxu0
    %v585 = vadd.f32 0.0, %v584
    %v586 = vpop.f32.mrb[0].mxu0
    %587 = vdwg.mxu0
    %588 = vrot.lane.b32.xlu0 %v172, 104
    %v589 = vpop.permute.xlu0 %588
    %590 = vrot.lane.b32.xlu0 %v257, 104
    %v591 = vpop.permute.xlu0 %590
    %v592 = vsel %vm355, %v589, 0
    %v594 = vsel %vm355, %v591, 0
    %596 = vmatprep.subr.mxu0 0.0
    %597 = vmatpush1.xpose.msra.mxu0 %v594
    %598 = vmatprep.subr.mxu0 0.0
    %599 = vmatpush1.xpose.msra.mxu0 0.0
    %600 = vmatprep.subr.mxu0 0.0
    %601 = vmatpush1.xpose.msra.mxu0 0.0
    %602 = vmatprep.subr.mxu0 0.0
    %603 = vmatpush1.xpose.msra.mxu0 0.0
    %604 = vmatprep.subr.mxu0 0.0
    %605 = vmatpush1.xpose.msra.mxu0 0.0
    %606 = vmatprep.subr.mxu0 0.0
    %607 = vmatpush1.xpose.msra.mxu0 0.0
    %608 = vmatprep.subr.mxu0 0.0
    %609 = vmatpush1.xpose.msra.mxu0 0.0
    %610 = vmatprep.subr.mxu0 0.0
    %611 = vmatpush1.xpose.msra.mxu0 0.0
    %612 = vmatprep.subr.mxu0 0.0
    %613 = vmatpush1.xpose.msra.mxu0 0.0
    %614 = vmatprep.subr.mxu0 0.0
    %615 = vmatpush1.xpose.msra.mxu0 0.0
    %616 = vmatprep.subr.mxu0 0.0
    %617 = vmatpush1.xpose.msra.mxu0 0.0
    %618 = vmatprep.subr.mxu0 0.0
    %619 = vmatpush1.xpose.msra.mxu0 0.0
    %620 = vmatprep.subr.mxu0 0.0
    %621 = vmatpush1.xpose.msra.mxu0 0.0
    %622 = vmatprep.subr.mxu0 0.0
    %623 = vmatpush1.xpose.msra.mxu0 0.0
    %624 = vmatprep.subr.mxu0 0.0
    %625 = vmatpush1.xpose.msra.mxu0 0.0
    %626 = vmatprep.subr.mxu0 0.0
    %627 = vmatpush1.xpose.msra.mxu0 0.0
    %628 = vmatprep.subr.mxu0 0.0
    %629 = vmatpush1.xpose.msra.mxu0 0.0
    %630 = vmatprep.subr.mxu0 0.0
    %631 = vmatpush1.xpose.msra.mxu0 0.0
    %632 = vmatprep.subr.mxu0 0.0
    %633 = vmatpush1.xpose.msra.mxu0 0.0
    %634 = vmatprep.subr.mxu0 0.0
    %635 = vmatpush1.xpose.msra.mxu0 0.0
    %636 = vmatprep.subr.mxu0 0.0
    %637 = vmatpush1.xpose.msra.mxu0 0.0
    %638 = vmatprep.subr.mxu0 0.0
    %639 = vmatpush1.xpose.msra.mxu0 0.0
    %640 = vmatprep.subr.mxu0 0.0
    %641 = vmatpush1.xpose.msra.mxu0 0.0
    %642 = vmatprep.subr.mxu0 0.0
    %643 = vmatpush1.xpose.msra.mxu0 0.0
    %644 = vmatprep.subr.mxu0 0.0
    %645 = vmatpush1.xpose.msra.mxu0 0.0
    %646 = vmatprep.subr.mxu0 0.0
    %647 = vmatpush1.xpose.msra.mxu0 0.0
    %648 = vmatprep.subr.mxu0 0.0
    %649 = vmatpush1.xpose.msra.mxu0 0.0
    %650 = vmatprep.subr.mxu0 0.0
    %651 = vmatpush1.xpose.msra.mxu0 0.0
    %652 = vmatprep.subr.mxu0 0.0
    %653 = vmatpush1.xpose.msra.mxu0 0.0
    %654 = vmatprep.subr.mxu0 0.0
    %655 = vmatpush1.xpose.msra.mxu0 0.0
    %656 = vmatprep.subr.mxu0 0.0
    %657 = vmatpush1.xpose.msra.mxu0 0.0
    %658 = vmatprep.subr.mxu0 0.0
    %659 = vmatpush1.xpose.msra.mxu0 0.0
    %660 = vmatprep.mubr.f32.mxu0 0.0
    %661 = vmatmul.mubr.f32.gmra.mrb[0].mxu0 %v592
    %v662 = vpop.f32.mrb[0].mxu0
    %v663 = vadd.f32 0.0, %v662
    %v664 = vpop.f32.mrb[0].mxu0
    %665 = vdwg.mxu0
    %v667 = vsel %vm355, %v177, 0
    %v670 = vsel %vm355, %v262, 0
    %672 = vmatprep.subr.mxu0 0.0
    %673 = vmatpush1.xpose.msra.mxu0 %v670
    %674 = vmatprep.subr.mxu0 0.0
    %675 = vmatpush1.xpose.msra.mxu0 0.0
    %676 = vmatprep.subr.mxu0 0.0
    %677 = vmatpush1.xpose.msra.mxu0 0.0
    %678 = vmatprep.subr.mxu0 0.0
    %679 = vmatpush1.xpose.msra.mxu0 0.0
    %680 = vmatprep.subr.mxu0 0.0
    %681 = vmatpush1.xpose.msra.mxu0 0.0
    %682 = vmatprep.subr.mxu0 0.0
    %683 = vmatpush1.xpose.msra.mxu0 0.0
    %684 = vmatprep.subr.mxu0 0.0
    %685 = vmatpush1.xpose.msra.mxu0 0.0
    %686 = vmatprep.subr.mxu0 0.0
    %687 = vmatpush1.xpose.msra.mxu0 0.0
    %688 = vmatprep.subr.mxu0 0.0
    %689 = vmatpush1.xpose.msra.mxu0 0.0
    %690 = vmatprep.subr.mxu0 0.0
    %691 = vmatpush1.xpose.msra.mxu0 0.0
    %692 = vmatprep.subr.mxu0 0.0
    %693 = vmatpush1.xpose.msra.mxu0 0.0
    %694 = vmatprep.subr.mxu0 0.0
    %695 = vmatpush1.xpose.msra.mxu0 0.0
    %696 = vmatprep.subr.mxu0 0.0
    %697 = vmatpush1.xpose.msra.mxu0 0.0
    %698 = vmatprep.subr.mxu0 0.0
    %699 = vmatpush1.xpose.msra.mxu0 0.0
    %700 = vmatprep.subr.mxu0 0.0
    %701 = vmatpush1.xpose.msra.mxu0 0.0
    %702 = vmatprep.subr.mxu0 0.0
    %703 = vmatpush1.xpose.msra.mxu0 0.0
    %704 = vmatprep.subr.mxu0 0.0
    %705 = vmatpush1.xpose.msra.mxu0 0.0
    %706 = vmatprep.subr.mxu0 0.0
    %707 = vmatpush1.xpose.msra.mxu0 0.0
    %708 = vmatprep.subr.mxu0 0.0
    %709 = vmatpush1.xpose.msra.mxu0 0.0
    %710 = vmatprep.subr.mxu0 0.0
    %711 = vmatpush1.xpose.msra.mxu0 0.0
    %712 = vmatprep.subr.mxu0 0.0
    %713 = vmatpush1.xpose.msra.mxu0 0.0
    %714 = vmatprep.subr.mxu0 0.0
    %715 = vmatpush1.xpose.msra.mxu0 0.0
    %716 = vmatprep.subr.mxu0 0.0
    %717 = vmatpush1.xpose.msra.mxu0 0.0
    %718 = vmatprep.subr.mxu0 0.0
    %719 = vmatpush1.xpose.msra.mxu0 0.0
    %720 = vmatprep.subr.mxu0 0.0
    %721 = vmatpush1.xpose.msra.mxu0 0.0
    %722 = vmatprep.subr.mxu0 0.0
    %723 = vmatpush1.xpose.msra.mxu0 0.0
    %724 = vmatprep.subr.mxu0 0.0
    %725 = vmatpush1.xpose.msra.mxu0 0.0
    %726 = vmatprep.subr.mxu0 0.0
    %727 = vmatpush1.xpose.msra.mxu0 0.0
    %728 = vmatprep.subr.mxu0 0.0
    %729 = vmatpush1.xpose.msra.mxu0 0.0
    %730 = vmatprep.subr.mxu0 0.0
    %731 = vmatpush1.xpose.msra.mxu0 0.0
    %732 = vmatprep.subr.mxu0 0.0
    %733 = vmatpush1.xpose.msra.mxu0 0.0
    %734 = vmatprep.subr.mxu0 0.0
    %735 = vmatpush1.xpose.msra.mxu0 0.0
    %736 = vmatprep.mubr.f32.mxu0 0.0
    %737 = vmatmul.mubr.f32.gmra.mrb[0].mxu0 %v667
    %v738 = vpop.f32.mrb[0].mxu0
    %v739 = vadd.f32 0.0, %v738
    %v740 = vpop.f32.mrb[0].mxu0
    %741 = vdwg.mxu0
    %742 = vrot.lane.b32.xlu0 %v177, 120
    %v743 = vpop.permute.xlu0 %742
    %744 = vrot.lane.b32.xlu0 %v262, 120
    %v745 = vpop.permute.xlu0 %744
    %v746 = vsel %vm355, %v743, 0
    %v748 = vsel %vm355, %v745, 0
    %750 = vmatprep.subr.mxu0 0.0
    %751 = vmatpush1.xpose.msra.mxu0 %v748
    %752 = vmatprep.subr.mxu0 0.0
    %753 = vmatpush1.xpose.msra.mxu0 0.0
    %754 = vmatprep.subr.mxu0 0.0
    %755 = vmatpush1.xpose.msra.mxu0 0.0
    %756 = vmatprep.subr.mxu0 0.0
    %757 = vmatpush1.xpose.msra.mxu0 0.0
    %758 = vmatprep.subr.mxu0 0.0
    %759 = vmatpush1.xpose.msra.mxu0 0.0
    %760 = vmatprep.subr.mxu0 0.0
    %761 = vmatpush1.xpose.msra.mxu0 0.0
    %762 = vmatprep.subr.mxu0 0.0
    %763 = vmatpush1.xpose.msra.mxu0 0.0
    %764 = vmatprep.subr.mxu0 0.0
    %765 = vmatpush1.xpose.msra.mxu0 0.0
    %766 = vmatprep.subr.mxu0 0.0
    %767 = vmatpush1.xpose.msra.mxu0 0.0
    %768 = vmatprep.subr.mxu0 0.0
    %769 = vmatpush1.xpose.msra.mxu0 0.0
    %770 = vmatprep.subr.mxu0 0.0
    %771 = vmatpush1.xpose.msra.mxu0 0.0
    %772 = vmatprep.subr.mxu0 0.0
    %773 = vmatpush1.xpose.msra.mxu0 0.0
    %774 = vmatprep.subr.mxu0 0.0
    %775 = vmatpush1.xpose.msra.mxu0 0.0
    %776 = vmatprep.subr.mxu0 0.0
    %777 = vmatpush1.xpose.msra.mxu0 0.0
    %778 = vmatprep.subr.mxu0 0.0
    %779 = vmatpush1.xpose.msra.mxu0 0.0
    %780 = vmatprep.subr.mxu0 0.0
    %781 = vmatpush1.xpose.msra.mxu0 0.0
    %782 = vmatprep.subr.mxu0 0.0
    %783 = vmatpush1.xpose.msra.mxu0 0.0
    %784 = vmatprep.subr.mxu0 0.0
    %785 = vmatpush1.xpose.msra.mxu0 0.0
    %786 = vmatprep.subr.mxu0 0.0
    %787 = vmatpush1.xpose.msra.mxu0 0.0
    %788 = vmatprep.subr.mxu0 0.0
    %789 = vmatpush1.xpose.msra.mxu0 0.0
    %790 = vmatprep.subr.mxu0 0.0
    %791 = vmatpush1.xpose.msra.mxu0 0.0
    %792 = vmatprep.subr.mxu0 0.0
    %793 = vmatpush1.xpose.msra.mxu0 0.0
    %794 = vmatprep.subr.mxu0 0.0
    %795 = vmatpush1.xpose.msra.mxu0 0.0
    %796 = vmatprep.subr.mxu0 0.0
    %797 = vmatpush1.xpose.msra.mxu0 0.0
    %798 = vmatprep.subr.mxu0 0.0
    %799 = vmatpush1.xpose.msra.mxu0 0.0
    %800 = vmatprep.subr.mxu0 0.0
    %801 = vmatpush1.xpose.msra.mxu0 0.0
    %802 = vmatprep.subr.mxu0 0.0
    %803 = vmatpush1.xpose.msra.mxu0 0.0
    %804 = vmatprep.subr.mxu0 0.0
    %805 = vmatpush1.xpose.msra.mxu0 0.0
    %806 = vmatprep.subr.mxu0 0.0
    %807 = vmatpush1.xpose.msra.mxu0 0.0
    %808 = vmatprep.subr.mxu0 0.0
    %809 = vmatpush1.xpose.msra.mxu0 0.0
    %810 = vmatprep.subr.mxu0 0.0
    %811 = vmatpush1.xpose.msra.mxu0 0.0
    %812 = vmatprep.subr.mxu0 0.0
    %813 = vmatpush1.xpose.msra.mxu0 0.0
    %814 = vmatprep.mubr.f32.mxu0 0.0
    %815 = vmatmul.mubr.f32.gmra.mrb[0].mxu0 %v746
    %v816 = vpop.f32.mrb[0].mxu0
    %v817 = vadd.f32 0.0, %v816
    %v818 = vpop.f32.mrb[0].mxu0
    %819 = vdwg.mxu0
    %820 = vrot.lane.b32.xlu0 %v177, 112
    %v821 = vpop.permute.xlu0 %820
    %822 = vrot.lane.b32.xlu0 %v262, 112
    %v823 = vpop.permute.xlu0 %822
    %v824 = vsel %vm355, %v821, 0
    %v826 = vsel %vm355, %v823, 0
    %828 = vmatprep.subr.mxu0 0.0
    %829 = vmatpush1.xpose.msra.mxu0 %v826
    %830 = vmatprep.subr.mxu0 0.0
    %831 = vmatpush1.xpose.msra.mxu0 0.0
    %832 = vmatprep.subr.mxu0 0.0
    %833 = vmatpush1.xpose.msra.mxu0 0.0
    %834 = vmatprep.subr.mxu0 0.0
    %835 = vmatpush1.xpose.msra.mxu0 0.0
    %836 = vmatprep.subr.mxu0 0.0
    %837 = vmatpush1.xpose.msra.mxu0 0.0
    %838 = vmatprep.subr.mxu0 0.0
    %839 = vmatpush1.xpose.msra.mxu0 0.0
    %840 = vmatprep.subr.mxu0 0.0
    %841 = vmatpush1.xpose.msra.mxu0 0.0
    %842 = vmatprep.subr.mxu0 0.0
    %843 = vmatpush1.xpose.msra.mxu0 0.0
    %844 = vmatprep.subr.mxu0 0.0
    %845 = vmatpush1.xpose.msra.mxu0 0.0
    %846 = vmatprep.subr.mxu0 0.0
    %847 = vmatpush1.xpose.msra.mxu0 0.0
    %848 = vmatprep.subr.mxu0 0.0
    %849 = vmatpush1.xpose.msra.mxu0 0.0
    %850 = vmatprep.subr.mxu0 0.0
    %851 = vmatpush1.xpose.msra.mxu0 0.0
    %852 = vmatprep.subr.mxu0 0.0
    %853 = vmatpush1.xpose.msra.mxu0 0.0
    %854 = vmatprep.subr.mxu0 0.0
    %855 = vmatpush1.xpose.msra.mxu0 0.0
    %856 = vmatprep.subr.mxu0 0.0
    %857 = vmatpush1.xpose.msra.mxu0 0.0
    %858 = vmatprep.subr.mxu0 0.0
    %859 = vmatpush1.xpose.msra.mxu0 0.0
    %860 = vmatprep.subr.mxu0 0.0
    %861 = vmatpush1.xpose.msra.mxu0 0.0
    %862 = vmatprep.subr.mxu0 0.0
    %863 = vmatpush1.xpose.msra.mxu0 0.0
    %864 = vmatprep.subr.mxu0 0.0
    %865 = vmatpush1.xpose.msra.mxu0 0.0
    %866 = vmatprep.subr.mxu0 0.0
    %867 = vmatpush1.xpose.msra.mxu0 0.0
    %868 = vmatprep.subr.mxu0 0.0
    %869 = vmatpush1.xpose.msra.mxu0 0.0
    %870 = vmatprep.subr.mxu0 0.0
    %871 = vmatpush1.xpose.msra.mxu0 0.0
    %872 = vmatprep.subr.mxu0 0.0
    %873 = vmatpush1.xpose.msra.mxu0 0.0
    %874 = vmatprep.subr.mxu0 0.0
    %875 = vmatpush1.xpose.msra.mxu0 0.0
    %876 = vmatprep.subr.mxu0 0.0
    %877 = vmatpush1.xpose.msra.mxu0 0.0
    %878 = vmatprep.subr.mxu0 0.0
    %879 = vmatpush1.xpose.msra.mxu0 0.0
    %880 = vmatprep.subr.mxu0 0.0
    %881 = vmatpush1.xpose.msra.mxu0 0.0
    %882 = vmatprep.subr.mxu0 0.0
    %883 = vmatpush1.xpose.msra.mxu0 0.0
    %884 = vmatprep.subr.mxu0 0.0
    %885 = vmatpush1.xpose.msra.mxu0 0.0
    %886 = vmatprep.subr.mxu0 0.0
    %887 = vmatpush1.xpose.msra.mxu0 0.0
    %888 = vmatprep.subr.mxu0 0.0
    %889 = vmatpush1.xpose.msra.mxu0 0.0
    %890 = vmatprep.subr.mxu0 0.0
    %891 = vmatpush1.xpose.msra.mxu0 0.0
    %892 = vmatprep.mubr.f32.mxu0 0.0
    %893 = vmatmul.mubr.f32.gmra.mrb[0].mxu0 %v824
    %v894 = vpop.f32.mrb[0].mxu0
    %v895 = vadd.f32 0.0, %v894
    %v896 = vpop.f32.mrb[0].mxu0
    %897 = vdwg.mxu0
    %898 = vrot.lane.b32.xlu0 %v177, 104
    %v899 = vpop.permute.xlu0 %898
    %900 = vrot.lane.b32.xlu0 %v262, 104
    %v901 = vpop.permute.xlu0 %900
    %v902 = vsel %vm355, %v899, 0
    %v904 = vsel %vm355, %v901, 0
    %906 = vmatprep.subr.mxu0 0.0
    %907 = vmatpush1.xpose.msra.mxu0 %v904
    %908 = vmatprep.subr.mxu0 0.0
    %909 = vmatpush1.xpose.msra.mxu0 0.0
    %910 = vmatprep.subr.mxu0 0.0
    %911 = vmatpush1.xpose.msra.mxu0 0.0
    %912 = vmatprep.subr.mxu0 0.0
    %913 = vmatpush1.xpose.msra.mxu0 0.0
    %914 = vmatprep.subr.mxu0 0.0
    %915 = vmatpush1.xpose.msra.mxu0 0.0
    %916 = vmatprep.subr.mxu0 0.0
    %917 = vmatpush1.xpose.msra.mxu0 0.0
    %918 = vmatprep.subr.mxu0 0.0
    %919 = vmatpush1.xpose.msra.mxu0 0.0
    %920 = vmatprep.subr.mxu0 0.0
    %921 = vmatpush1.xpose.msra.mxu0 0.0
    %922 = vmatprep.subr.mxu0 0.0
    %923 = vmatpush1.xpose.msra.mxu0 0.0
    %924 = vmatprep.subr.mxu0 0.0
    %925 = vmatpush1.xpose.msra.mxu0 0.0
    %926 = vmatprep.subr.mxu0 0.0
    %927 = vmatpush1.xpose.msra.mxu0 0.0
    %928 = vmatprep.subr.mxu0 0.0
    %929 = vmatpush1.xpose.msra.mxu0 0.0
    %930 = vmatprep.subr.mxu0 0.0
    %931 = vmatpush1.xpose.msra.mxu0 0.0
    %932 = vmatprep.subr.mxu0 0.0
    %933 = vmatpush1.xpose.msra.mxu0 0.0
    %934 = vmatprep.subr.mxu0 0.0
    %935 = vmatpush1.xpose.msra.mxu0 0.0
    %936 = vmatprep.subr.mxu0 0.0
    %937 = vmatpush1.xpose.msra.mxu0 0.0
    %938 = vmatprep.subr.mxu0 0.0
    %939 = vmatpush1.xpose.msra.mxu0 0.0
    %940 = vmatprep.subr.mxu0 0.0
    %941 = vmatpush1.xpose.msra.mxu0 0.0
    %942 = vmatprep.subr.mxu0 0.0
    %943 = vmatpush1.xpose.msra.mxu0 0.0
    %944 = vmatprep.subr.mxu0 0.0
    %945 = vmatpush1.xpose.msra.mxu0 0.0
    %946 = vmatprep.subr.mxu0 0.0
    %947 = vmatpush1.xpose.msra.mxu0 0.0
    %948 = vmatprep.subr.mxu0 0.0
    %949 = vmatpush1.xpose.msra.mxu0 0.0
    %950 = vmatprep.subr.mxu0 0.0
    %951 = vmatpush1.xpose.msra.mxu0 0.0
    %952 = vmatprep.subr.mxu0 0.0
    %953 = vmatpush1.xpose.msra.mxu0 0.0
    %954 = vmatprep.subr.mxu0 0.0
    %955 = vmatpush1.xpose.msra.mxu0 0.0
    %956 = vmatprep.subr.mxu0 0.0
    %957 = vmatpush1.xpose.msra.mxu0 0.0
    %958 = vmatprep.subr.mxu0 0.0
    %959 = vmatpush1.xpose.msra.mxu0 0.0
    %960 = vmatprep.subr.mxu0 0.0
    %961 = vmatpush1.xpose.msra.mxu0 0.0
    %962 = vmatprep.subr.mxu0 0.0
    %963 = vmatpush1.xpose.msra.mxu0 0.0
    %964 = vmatprep.subr.mxu0 0.0
    %965 = vmatpush1.xpose.msra.mxu0 0.0
    %966 = vmatprep.subr.mxu0 0.0
    %967 = vmatpush1.xpose.msra.mxu0 0.0
    %968 = vmatprep.subr.mxu0 0.0
    %969 = vmatpush1.xpose.msra.mxu0 0.0
    %970 = vmatprep.mubr.f32.mxu0 0.0
    %971 = vmatmul.mubr.f32.gmra.mrb[0].mxu0 %v902
    %v972 = vpop.f32.mrb[0].mxu0
    %v973 = vadd.f32 0.0, %v972
    %v974 = vpop.f32.mrb[0].mxu0
    %975 = vdwg.mxu0
    %v976 = vsel %vm355, %v429, -inf
    %977 = vmax.xlane.f32.xlu0 %v976
    %v978 = vpop.xlane.xlu0 %977
    %v979 = vsel %vm355, %v507, -inf
    %980 = vmax.xlane.f32.xlu0 %v979
    %v981 = vpop.xlane.xlu0 %980
    %v982 = vsel %vm355, %v585, -inf
    %983 = vmax.xlane.f32.xlu0 %v982
    %v984 = vpop.xlane.xlu0 %983
    %v985 = vsel %vm355, %v663, -inf
    %986 = vmax.xlane.f32.xlu0 %v985
    %v987 = vpop.xlane.xlu0 %986
    %v988 = vsel %vm355, %v739, -inf
    %989 = vmax.xlane.f32.xlu0 %v988
    %v990 = vpop.xlane.xlu0 %989
    %v991 = vsel %vm355, %v817, -inf
    %992 = vmax.xlane.f32.xlu0 %v991
    %v993 = vpop.xlane.xlu0 %992
    %v994 = vsel %vm355, %v895, -inf
    %995 = vmax.xlane.f32.xlu0 %v994
    %v996 = vpop.xlane.xlu0 %995
    %v997 = vsel %vm355, %v973, -inf
    %998 = vmax.xlane.f32.xlu0 %v997
    %v999 = vpop.xlane.xlu0 %998
    %v1000 = vsub.f32 %v429, %v978
    %v1001 = vsub.f32 %v507, %v981
    %v1002 = vsub.f32 %v585, %v984
    %v1003 = vsub.f32 %v663, %v987
    %v1004 = vsub.f32 %v739, %v990
    %v1005 = vsub.f32 %v817, %v993
    %v1006 = vsub.f32 %v895, %v996
    %v1007 = vsub.f32 %v973, %v999
    %v1008 = vmul.f32 %v1000, 1.442695
    %v1009 = vpow.pop %v1008
    %v1010 = vmul.f32 %v1001, 1.442695
    %v1011 = vpow.pop %v1010
    %v1012 = vmul.f32 %v1002, 1.442695
    %v1013 = vpow.pop %v1012
    %v1014 = vmul.f32 %v1003, 1.442695
    %v1015 = vpow.pop %v1014
    %v1016 = vmul.f32 %v1004, 1.442695
    %v1017 = vpow.pop %v1016
    %v1018 = vmul.f32 %v1005, 1.442695
    %v1019 = vpow.pop %v1018
    %v1020 = vmul.f32 %v1006, 1.442695
    %v1021 = vpow.pop %v1020
    %v1022 = vmul.f32 %v1007, 1.442695
    %v1023 = vpow.pop %v1022
    %v1024 = vsel %vm355, %v1009, 0.0
    %1025 = vadd.xlane.f32.xlu0 %v1024
    %v1026 = vpop.xlane.xlu0 %1025
    %v1027 = vsel %vm355, %v1011, 0.0
    %1028 = vadd.xlane.f32.xlu0 %v1027
    %v1029 = vpop.xlane.xlu0 %1028
    %v1030 = vsel %vm355, %v1013, 0.0
    %1031 = vadd.xlane.f32.xlu0 %v1030
    %v1032 = vpop.xlane.xlu0 %1031
    %v1033 = vsel %vm355, %v1015, 0.0
    %1034 = vadd.xlane.f32.xlu0 %v1033
    %v1035 = vpop.xlane.xlu0 %1034
    %v1036 = vsel %vm355, %v1017, 0.0
    %1037 = vadd.xlane.f32.xlu0 %v1036
    %v1038 = vpop.xlane.xlu0 %1037
    %v1039 = vsel %vm355, %v1019, 0.0
    %1040 = vadd.xlane.f32.xlu0 %v1039
    %v1041 = vpop.xlane.xlu0 %1040
    %v1042 = vsel %vm355, %v1021, 0.0
    %1043 = vadd.xlane.f32.xlu0 %v1042
    %v1044 = vpop.xlane.xlu0 %1043
    %v1045 = vsel %vm355, %v1023, 0.0
    %1046 = vadd.xlane.f32.xlu0 %v1045
    %v1047 = vpop.xlane.xlu0 %1046
    %v1048 = vrcp.pop %v1026
    %v1049 = vmul.f32 %v1009, %v1048
    %v1050 = vrcp.pop %v1029
    %v1051 = vmul.f32 %v1011, %v1050
    %v1052 = vrcp.pop %v1032
    %v1053 = vmul.f32 %v1013, %v1052
    %v1054 = vrcp.pop %v1035
    %v1055 = vmul.f32 %v1015, %v1054
    %v1056 = vrcp.pop %v1038
    %v1057 = vmul.f32 %v1017, %v1056
    %v1058 = vrcp.pop %v1041
    %v1059 = vmul.f32 %v1019, %v1058
    %v1060 = vrcp.pop %v1044
    %v1061 = vmul.f32 %v1021, %v1060
    %v1062 = vrcp.pop %v1047
    %v1063 = vmul.f32 %v1023, %v1062
    %v1065 = vsel %vm355, %v1049, 0
    %1067 = vmatprep.subr.mxu0 0.0
    %1068 = vmatpush1.msra.mxu0 %v342
    %1069 = vmatprep.subr.mxu0 0.0
    %1070 = vmatpush1.msra.mxu0 0.0
    %1071 = vmatprep.subr.mxu0 0.0
    %1072 = vmatpush1.msra.mxu0 0.0
    %1073 = vmatprep.subr.mxu0 0.0
    %1074 = vmatpush1.msra.mxu0 0.0
    %1075 = vmatprep.subr.mxu0 0.0
    %1076 = vmatpush1.msra.mxu0 0.0
    %1077 = vmatprep.subr.mxu0 0.0
    %1078 = vmatpush1.msra.mxu0 0.0
    %1079 = vmatprep.subr.mxu0 0.0
    %1080 = vmatpush1.msra.mxu0 0.0
    %1081 = vmatprep.subr.mxu0 0.0
    %1082 = vmatpush1.msra.mxu0 0.0
    %1083 = vmatprep.subr.mxu0 0.0
    %1084 = vmatpush1.msra.mxu0 0.0
    %1085 = vmatprep.subr.mxu0 0.0
    %1086 = vmatpush1.msra.mxu0 0.0
    %1087 = vmatprep.subr.mxu0 0.0
    %1088 = vmatpush1.msra.mxu0 0.0
    %1089 = vmatprep.subr.mxu0 0.0
    %1090 = vmatpush1.msra.mxu0 0.0
    %1091 = vmatprep.subr.mxu0 0.0
    %1092 = vmatpush1.msra.mxu0 0.0
    %1093 = vmatprep.subr.mxu0 0.0
    %1094 = vmatpush1.msra.mxu0 0.0
    %1095 = vmatprep.subr.mxu0 0.0
    %1096 = vmatpush1.msra.mxu0 0.0
    %1097 = vmatprep.subr.mxu0 0.0
    %1098 = vmatpush1.msra.mxu0 0.0
    %1099 = vmatprep.subr.mxu0 0.0
    %1100 = vmatpush1.msra.mxu0 0.0
    %1101 = vmatprep.subr.mxu0 0.0
    %1102 = vmatpush1.msra.mxu0 0.0
    %1103 = vmatprep.subr.mxu0 0.0
    %1104 = vmatpush1.msra.mxu0 0.0
    %1105 = vmatprep.subr.mxu0 0.0
    %1106 = vmatpush1.msra.mxu0 0.0
    %1107 = vmatprep.subr.mxu0 0.0
    %1108 = vmatpush1.msra.mxu0 0.0
    %1109 = vmatprep.subr.mxu0 0.0
    %1110 = vmatpush1.msra.mxu0 0.0
    %1111 = vmatprep.subr.mxu0 0.0
    %1112 = vmatpush1.msra.mxu0 0.0
    %1113 = vmatprep.subr.mxu0 0.0
    %1114 = vmatpush1.msra.mxu0 0.0
    %1115 = vmatprep.subr.mxu0 0.0
    %1116 = vmatpush1.msra.mxu0 0.0
    %1117 = vmatprep.subr.mxu0 0.0
    %1118 = vmatpush1.msra.mxu0 0.0
    %1119 = vmatprep.subr.mxu0 0.0
    %1120 = vmatpush1.msra.mxu0 0.0
    %1121 = vmatprep.subr.mxu0 0.0
    %1122 = vmatpush1.msra.mxu0 0.0
    %1123 = vmatprep.subr.mxu0 0.0
    %1124 = vmatpush1.msra.mxu0 0.0
    %1125 = vmatprep.subr.mxu0 0.0
    %1126 = vmatpush1.msra.mxu0 0.0
    %1127 = vmatprep.subr.mxu0 0.0
    %1128 = vmatpush1.msra.mxu0 0.0
    %1129 = vmatprep.subr.mxu0 0.0
    %1130 = vmatpush1.msra.mxu0 0.0
    %1131 = vmatprep.mubr.f32.mxu0 0.0
    %1132 = vmatmul.mubr.f32.gmra.mrb[0].mxu0 %v1065
    %v1133 = vpop.f32.mrb[0].mxu0
    %v1134 = vadd.f32 0.0, %v1133
    %v1135 = vpop.f32.mrb[0].mxu0
    %1136 = vdwg.mxu0
    %1138 = vrot.lane.b32.xlu0 %v342, 120
    %v1139 = vpop.permute.xlu0 %1138
    %v1142 = vsel %vm355, %v1051, 0
    %1144 = vmatprep.subr.mxu0 0.0
    %1145 = vmatpush1.msra.mxu0 %v1139
    %1146 = vmatprep.subr.mxu0 0.0
    %1147 = vmatpush1.msra.mxu0 0.0
    %1148 = vmatprep.subr.mxu0 0.0
    %1149 = vmatpush1.msra.mxu0 0.0
    %1150 = vmatprep.subr.mxu0 0.0
    %1151 = vmatpush1.msra.mxu0 0.0
    %1152 = vmatprep.subr.mxu0 0.0
    %1153 = vmatpush1.msra.mxu0 0.0
    %1154 = vmatprep.subr.mxu0 0.0
    %1155 = vmatpush1.msra.mxu0 0.0
    %1156 = vmatprep.subr.mxu0 0.0
    %1157 = vmatpush1.msra.mxu0 0.0
    %1158 = vmatprep.subr.mxu0 0.0
    %1159 = vmatpush1.msra.mxu0 0.0
    %1160 = vmatprep.subr.mxu0 0.0
    %1161 = vmatpush1.msra.mxu0 0.0
    %1162 = vmatprep.subr.mxu0 0.0
    %1163 = vmatpush1.msra.mxu0 0.0
    %1164 = vmatprep.subr.mxu0 0.0
    %1165 = vmatpush1.msra.mxu0 0.0
    %1166 = vmatprep.subr.mxu0 0.0
    %1167 = vmatpush1.msra.mxu0 0.0
    %1168 = vmatprep.subr.mxu0 0.0
    %1169 = vmatpush1.msra.mxu0 0.0
    %1170 = vmatprep.subr.mxu0 0.0
    %1171 = vmatpush1.msra.mxu0 0.0
    %1172 = vmatprep.subr.mxu0 0.0
    %1173 = vmatpush1.msra.mxu0 0.0
    %1174 = vmatprep.subr.mxu0 0.0
    %1175 = vmatpush1.msra.mxu0 0.0
    %1176 = vmatprep.subr.mxu0 0.0
    %1177 = vmatpush1.msra.mxu0 0.0
    %1178 = vmatprep.subr.mxu0 0.0
    %1179 = vmatpush1.msra.mxu0 0.0
    %1180 = vmatprep.subr.mxu0 0.0
    %1181 = vmatpush1.msra.mxu0 0.0
    %1182 = vmatprep.subr.mxu0 0.0
    %1183 = vmatpush1.msra.mxu0 0.0
    %1184 = vmatprep.subr.mxu0 0.0
    %1185 = vmatpush1.msra.mxu0 0.0
    %1186 = vmatprep.subr.mxu0 0.0
    %1187 = vmatpush1.msra.mxu0 0.0
    %1188 = vmatprep.subr.mxu0 0.0
    %1189 = vmatpush1.msra.mxu0 0.0
    %1190 = vmatprep.subr.mxu0 0.0
    %1191 = vmatpush1.msra.mxu0 0.0
    %1192 = vmatprep.subr.mxu0 0.0
    %1193 = vmatpush1.msra.mxu0 0.0
    %1194 = vmatprep.subr.mxu0 0.0
    %1195 = vmatpush1.msra.mxu0 0.0
    %1196 = vmatprep.subr.mxu0 0.0
    %1197 = vmatpush1.msra.mxu0 0.0
    %1198 = vmatprep.subr.mxu0 0.0
    %1199 = vmatpush1.msra.mxu0 0.0
    %1200 = vmatprep.subr.mxu0 0.0
    %1201 = vmatpush1.msra.mxu0 0.0
    %1202 = vmatprep.subr.mxu0 0.0
    %1203 = vmatpush1.msra.mxu0 0.0
    %1204 = vmatprep.subr.mxu0 0.0
    %1205 = vmatpush1.msra.mxu0 0.0
    %1206 = vmatprep.subr.mxu0 0.0
    %1207 = vmatpush1.msra.mxu0 0.0
    %1208 = vmatprep.mubr.f32.mxu0 0.0
    %1209 = vmatmul.mubr.f32.gmra.mrb[0].mxu0 %v1142
    %v1210 = vpop.f32.mrb[0].mxu0
    %v1211 = vadd.f32 0.0, %v1210
    %v1212 = vpop.f32.mrb[0].mxu0
    %1213 = vdwg.mxu0
    %v1215 = vsel %vm355, %v1211, 0
    %1217 = vmatprep.subr.mxu0 0.0
    %1218 = vmatpush1.msra.mxu0 %v351
    %1219 = vmatprep.subr.mxu0 0.0
    %1220 = vmatpush1.msra.mxu0 0.0
    %1221 = vmatprep.subr.mxu0 0.0
    %1222 = vmatpush1.msra.mxu0 0.0
    %1223 = vmatprep.subr.mxu0 0.0
    %1224 = vmatpush1.msra.mxu0 0.0
    %1225 = vmatprep.subr.mxu0 0.0
    %1226 = vmatpush1.msra.mxu0 0.0
    %1227 = vmatprep.subr.mxu0 0.0
    %1228 = vmatpush1.msra.mxu0 0.0
    %1229 = vmatprep.subr.mxu0 0.0
    %1230 = vmatpush1.msra.mxu0 0.0
    %1231 = vmatprep.subr.mxu0 0.0
    %1232 = vmatpush1.msra.mxu0 0.0
    %1233 = vmatprep.subr.mxu0 0.0
    %1234 = vmatpush1.msra.mxu0 0.0
    %1235 = vmatprep.subr.mxu0 0.0
    %1236 = vmatpush1.msra.mxu0 0.0
    %1237 = vmatprep.subr.mxu0 0.0
    %1238 = vmatpush1.msra.mxu0 0.0
    %1239 = vmatprep.subr.mxu0 0.0
    %1240 = vmatpush1.msra.mxu0 0.0
    %1241 = vmatprep.subr.mxu0 0.0
    %1242 = vmatpush1.msra.mxu0 0.0
    %1243 = vmatprep.subr.mxu0 0.0
    %1244 = vmatpush1.msra.mxu0 0.0
    %1245 = vmatprep.subr.mxu0 0.0
    %1246 = vmatpush1.msra.mxu0 0.0
    %1247 = vmatprep.subr.mxu0 0.0
    %1248 = vmatpush1.msra.mxu0 0.0
    %1249 = vmatprep.subr.mxu0 0.0
    %1250 = vmatpush1.msra.mxu0 0.0
    %1251 = vmatprep.subr.mxu0 0.0
    %1252 = vmatpush1.msra.mxu0 0.0
    %1253 = vmatprep.subr.mxu0 0.0
    %1254 = vmatpush1.msra.mxu0 0.0
    %1255 = vmatprep.subr.mxu0 0.0
    %1256 = vmatpush1.msra.mxu0 0.0
    %1257 = vmatprep.subr.mxu0 0.0
    %1258 = vmatpush1.msra.mxu0 0.0
    %1259 = vmatprep.subr.mxu0 0.0
    %1260 = vmatpush1.msra.mxu0 0.0
    %1261 = vmatprep.subr.mxu0 0.0
    %1262 = vmatpush1.msra.mxu0 0.0
    %1263 = vmatprep.subr.mxu0 0.0
    %1264 = vmatpush1.msra.mxu0 0.0
    %1265 = vmatprep.subr.mxu0 0.0
    %1266 = vmatpush1.msra.mxu0 0.0
    %1267 = vmatprep.subr.mxu0 0.0
    %1268 = vmatpush1.msra.mxu0 0.0
    %1269 = vmatprep.subr.mxu0 0.0
    %1270 = vmatpush1.msra.mxu0 0.0
    %1271 = vmatprep.subr.mxu0 0.0
    %1272 = vmatpush1.msra.mxu0 0.0
    %1273 = vmatprep.subr.mxu0 0.0
    %1274 = vmatpush1.msra.mxu0 0.0
    %1275 = vmatprep.subr.mxu0 0.0
    %1276 = vmatpush1.msra.mxu0 0.0
    %1277 = vmatprep.subr.mxu0 0.0
    %1278 = vmatpush1.msra.mxu0 0.0
    %1279 = vmatprep.subr.mxu0 0.0
    %1280 = vmatpush1.msra.mxu0 0.0
    %1281 = vmatprep.mubr.f32.mxu0 0.0
    %1282 = vmatmul.mubr.f32.gmra.mrb[0].mxu0 %v1215
    %v1283 = vpop.f32.mrb[0].mxu0
    %v1284 = vadd.f32 0.0, %v1283
    %v1285 = vpop.f32.mrb[0].mxu0
    %1286 = vdwg.mxu0
    %v1288 = vsel %vm355, %v1134, 0
    %1290 = vmatprep.subr.mxu0 0.0
    %1291 = vmatpush1.msra.mxu0 %v350
    %1292 = vmatprep.subr.mxu0 0.0
    %1293 = vmatpush1.msra.mxu0 0.0
    %1294 = vmatprep.subr.mxu0 0.0
    %1295 = vmatpush1.msra.mxu0 0.0
    %1296 = vmatprep.subr.mxu0 0.0
    %1297 = vmatpush1.msra.mxu0 0.0
    %1298 = vmatprep.subr.mxu0 0.0
    %1299 = vmatpush1.msra.mxu0 0.0
    %1300 = vmatprep.subr.mxu0 0.0
    %1301 = vmatpush1.msra.mxu0 0.0
    %1302 = vmatprep.subr.mxu0 0.0
    %1303 = vmatpush1.msra.mxu0 0.0
    %1304 = vmatprep.subr.mxu0 0.0
    %1305 = vmatpush1.msra.mxu0 0.0
    %1306 = vmatprep.subr.mxu0 0.0
    %1307 = vmatpush1.msra.mxu0 0.0
    %1308 = vmatprep.subr.mxu0 0.0
    %1309 = vmatpush1.msra.mxu0 0.0
    %1310 = vmatprep.subr.mxu0 0.0
    %1311 = vmatpush1.msra.mxu0 0.0
    %1312 = vmatprep.subr.mxu0 0.0
    %1313 = vmatpush1.msra.mxu0 0.0
    %1314 = vmatprep.subr.mxu0 0.0
    %1315 = vmatpush1.msra.mxu0 0.0
    %1316 = vmatprep.subr.mxu0 0.0
    %1317 = vmatpush1.msra.mxu0 0.0
    %1318 = vmatprep.subr.mxu0 0.0
    %1319 = vmatpush1.msra.mxu0 0.0
    %1320 = vmatprep.subr.mxu0 0.0
    %1321 = vmatpush1.msra.mxu0 0.0
    %1322 = vmatprep.subr.mxu0 0.0
    %1323 = vmatpush1.msra.mxu0 0.0
    %1324 = vmatprep.subr.mxu0 0.0
    %1325 = vmatpush1.msra.mxu0 0.0
    %1326 = vmatprep.subr.mxu0 0.0
    %1327 = vmatpush1.msra.mxu0 0.0
    %1328 = vmatprep.subr.mxu0 0.0
    %1329 = vmatpush1.msra.mxu0 0.0
    %1330 = vmatprep.subr.mxu0 0.0
    %1331 = vmatpush1.msra.mxu0 0.0
    %1332 = vmatprep.subr.mxu0 0.0
    %1333 = vmatpush1.msra.mxu0 0.0
    %1334 = vmatprep.subr.mxu0 0.0
    %1335 = vmatpush1.msra.mxu0 0.0
    %1336 = vmatprep.subr.mxu0 0.0
    %1337 = vmatpush1.msra.mxu0 0.0
    %1338 = vmatprep.subr.mxu0 0.0
    %1339 = vmatpush1.msra.mxu0 0.0
    %1340 = vmatprep.subr.mxu0 0.0
    %1341 = vmatpush1.msra.mxu0 0.0
    %1342 = vmatprep.subr.mxu0 0.0
    %1343 = vmatpush1.msra.mxu0 0.0
    %1344 = vmatprep.subr.mxu0 0.0
    %1345 = vmatpush1.msra.mxu0 0.0
    %1346 = vmatprep.subr.mxu0 0.0
    %1347 = vmatpush1.msra.mxu0 0.0
    %1348 = vmatprep.subr.mxu0 0.0
    %1349 = vmatpush1.msra.mxu0 0.0
    %1350 = vmatprep.subr.mxu0 0.0
    %1351 = vmatpush1.msra.mxu0 0.0
    %1352 = vmatprep.subr.mxu0 0.0
    %1353 = vmatpush1.msra.mxu0 0.0
    %1354 = vmatprep.mubr.f32.mxu0 0.0
    %1355 = vmatmul.mubr.f32.gmra.mrb[0].mxu0 %v1288
    %v1356 = vpop.f32.mrb[0].mxu0
    %v1357 = vadd.f32 %v1284, %v1356
    %v1358 = vpop.f32.mrb[0].mxu0
    %1359 = vdwg.mxu0
    %1360 = vrot.lane.b32.xlu0 %v342, 112
    %v1361 = vpop.permute.xlu0 %1360
    %v1364 = vsel %vm355, %v1053, 0
    %1366 = vmatprep.subr.mxu0 0.0
    %1367 = vmatpush1.msra.mxu0 %v1361
    %1368 = vmatprep.subr.mxu0 0.0
    %1369 = vmatpush1.msra.mxu0 0.0
    %1370 = vmatprep.subr.mxu0 0.0
    %1371 = vmatpush1.msra.mxu0 0.0
    %1372 = vmatprep.subr.mxu0 0.0
    %1373 = vmatpush1.msra.mxu0 0.0
    %1374 = vmatprep.subr.mxu0 0.0
    %1375 = vmatpush1.msra.mxu0 0.0
    %1376 = vmatprep.subr.mxu0 0.0
    %1377 = vmatpush1.msra.mxu0 0.0
    %1378 = vmatprep.subr.mxu0 0.0
    %1379 = vmatpush1.msra.mxu0 0.0
    %1380 = vmatprep.subr.mxu0 0.0
    %1381 = vmatpush1.msra.mxu0 0.0
    %1382 = vmatprep.subr.mxu0 0.0
    %1383 = vmatpush1.msra.mxu0 0.0
    %1384 = vmatprep.subr.mxu0 0.0
    %1385 = vmatpush1.msra.mxu0 0.0
    %1386 = vmatprep.subr.mxu0 0.0
    %1387 = vmatpush1.msra.mxu0 0.0
    %1388 = vmatprep.subr.mxu0 0.0
    %1389 = vmatpush1.msra.mxu0 0.0
    %1390 = vmatprep.subr.mxu0 0.0
    %1391 = vmatpush1.msra.mxu0 0.0
    %1392 = vmatprep.subr.mxu0 0.0
    %1393 = vmatpush1.msra.mxu0 0.0
    %1394 = vmatprep.subr.mxu0 0.0
    %1395 = vmatpush1.msra.mxu0 0.0
    %1396 = vmatprep.subr.mxu0 0.0
    %1397 = vmatpush1.msra.mxu0 0.0
    %1398 = vmatprep.subr.mxu0 0.0
    %1399 = vmatpush1.msra.mxu0 0.0
    %1400 = vmatprep.subr.mxu0 0.0
    %1401 = vmatpush1.msra.mxu0 0.0
    %1402 = vmatprep.subr.mxu0 0.0
    %1403 = vmatpush1.msra.mxu0 0.0
    %1404 = vmatprep.subr.mxu0 0.0
    %1405 = vmatpush1.msra.mxu0 0.0
    %1406 = vmatprep.subr.mxu0 0.0
    %1407 = vmatpush1.msra.mxu0 0.0
    %1408 = vmatprep.subr.mxu0 0.0
    %1409 = vmatpush1.msra.mxu0 0.0
    %1410 = vmatprep.subr.mxu0 0.0
    %1411 = vmatpush1.msra.mxu0 0.0
    %1412 = vmatprep.subr.mxu0 0.0
    %1413 = vmatpush1.msra.mxu0 0.0
    %1414 = vmatprep.subr.mxu0 0.0
    %1415 = vmatpush1.msra.mxu0 0.0
    %1416 = vmatprep.subr.mxu0 0.0
    %1417 = vmatpush1.msra.mxu0 0.0
    %1418 = vmatprep.subr.mxu0 0.0
    %1419 = vmatpush1.msra.mxu0 0.0
    %1420 = vmatprep.subr.mxu0 0.0
    %1421 = vmatpush1.msra.mxu0 0.0
    %1422 = vmatprep.subr.mxu0 0.0
    %1423 = vmatpush1.msra.mxu0 0.0
    %1424 = vmatprep.subr.mxu0 0.0
    %1425 = vmatpush1.msra.mxu0 0.0
    %1426 = vmatprep.subr.mxu0 0.0
    %1427 = vmatpush1.msra.mxu0 0.0
    %1428 = vmatprep.subr.mxu0 0.0
    %1429 = vmatpush1.msra.mxu0 0.0
    %1430 = vmatprep.mubr.f32.mxu0 0.0
    %1431 = vmatmul.mubr.f32.gmra.mrb[0].mxu0 %v1364
    %v1432 = vpop.f32.mrb[0].mxu0
    %v1433 = vadd.f32 0.0, %v1432
    %v1434 = vpop.f32.mrb[0].mxu0
    %1435 = vdwg.mxu0
    %v1437 = vsel %vm355, %v1433, 0
    %1439 = vmatprep.subr.mxu0 0.0
    %1440 = vmatpush1.msra.mxu0 %v352
    %1441 = vmatprep.subr.mxu0 0.0
    %1442 = vmatpush1.msra.mxu0 0.0
    %1443 = vmatprep.subr.mxu0 0.0
    %1444 = vmatpush1.msra.mxu0 0.0
    %1445 = vmatprep.subr.mxu0 0.0
    %1446 = vmatpush1.msra.mxu0 0.0
    %1447 = vmatprep.subr.mxu0 0.0
    %1448 = vmatpush1.msra.mxu0 0.0
    %1449 = vmatprep.subr.mxu0 0.0
    %1450 = vmatpush1.msra.mxu0 0.0
    %1451 = vmatprep.subr.mxu0 0.0
    %1452 = vmatpush1.msra.mxu0 0.0
    %1453 = vmatprep.subr.mxu0 0.0
    %1454 = vmatpush1.msra.mxu0 0.0
    %1455 = vmatprep.subr.mxu0 0.0
    %1456 = vmatpush1.msra.mxu0 0.0
    %1457 = vmatprep.subr.mxu0 0.0
    %1458 = vmatpush1.msra.mxu0 0.0
    %1459 = vmatprep.subr.mxu0 0.0
    %1460 = vmatpush1.msra.mxu0 0.0
    %1461 = vmatprep.subr.mxu0 0.0
    %1462 = vmatpush1.msra.mxu0 0.0
    %1463 = vmatprep.subr.mxu0 0.0
    %1464 = vmatpush1.msra.mxu0 0.0
    %1465 = vmatprep.subr.mxu0 0.0
    %1466 = vmatpush1.msra.mxu0 0.0
    %1467 = vmatprep.subr.mxu0 0.0
    %1468 = vmatpush1.msra.mxu0 0.0
    %1469 = vmatprep.subr.mxu0 0.0
    %1470 = vmatpush1.msra.mxu0 0.0
    %1471 = vmatprep.subr.mxu0 0.0
    %1472 = vmatpush1.msra.mxu0 0.0
    %1473 = vmatprep.subr.mxu0 0.0
    %1474 = vmatpush1.msra.mxu0 0.0
    %1475 = vmatprep.subr.mxu0 0.0
    %1476 = vmatpush1.msra.mxu0 0.0
    %1477 = vmatprep.subr.mxu0 0.0
    %1478 = vmatpush1.msra.mxu0 0.0
    %1479 = vmatprep.subr.mxu0 0.0
    %1480 = vmatpush1.msra.mxu0 0.0
    %1481 = vmatprep.subr.mxu0 0.0
    %1482 = vmatpush1.msra.mxu0 0.0
    %1483 = vmatprep.subr.mxu0 0.0
    %1484 = vmatpush1.msra.mxu0 0.0
    %1485 = vmatprep.subr.mxu0 0.0
    %1486 = vmatpush1.msra.mxu0 0.0
    %1487 = vmatprep.subr.mxu0 0.0
    %1488 = vmatpush1.msra.mxu0 0.0
    %1489 = vmatprep.subr.mxu0 0.0
    %1490 = vmatpush1.msra.mxu0 0.0
    %1491 = vmatprep.subr.mxu0 0.0
    %1492 = vmatpush1.msra.mxu0 0.0
    %1493 = vmatprep.subr.mxu0 0.0
    %1494 = vmatpush1.msra.mxu0 0.0
    %1495 = vmatprep.subr.mxu0 0.0
    %1496 = vmatpush1.msra.mxu0 0.0
    %1497 = vmatprep.subr.mxu0 0.0
    %1498 = vmatpush1.msra.mxu0 0.0
    %1499 = vmatprep.subr.mxu0 0.0
    %1500 = vmatpush1.msra.mxu0 0.0
    %1501 = vmatprep.subr.mxu0 0.0
    %1502 = vmatpush1.msra.mxu0 0.0
    %1503 = vmatprep.mubr.f32.mxu0 0.0
    %1504 = vmatmul.mubr.f32.gmra.mrb[0].mxu0 %v1437
    %v1505 = vpop.f32.mrb[0].mxu0
    %v1506 = vadd.f32 0.0, %v1505
    %v1507 = vpop.f32.mrb[0].mxu0
    %1508 = vdwg.mxu0
    %v1509 = vadd.f32 %v1357, %v1506
    %1510 = vrot.lane.b32.xlu0 %v342, 104
    %v1511 = vpop.permute.xlu0 %1510
    %v1514 = vsel %vm355, %v1055, 0
    %1516 = vmatprep.subr.mxu0 0.0
    %1517 = vmatpush1.msra.mxu0 %v1511
    %1518 = vmatprep.subr.mxu0 0.0
    %1519 = vmatpush1.msra.mxu0 0.0
    %1520 = vmatprep.subr.mxu0 0.0
    %1521 = vmatpush1.msra.mxu0 0.0
    %1522 = vmatprep.subr.mxu0 0.0
    %1523 = vmatpush1.msra.mxu0 0.0
    %1524 = vmatprep.subr.mxu0 0.0
    %1525 = vmatpush1.msra.mxu0 0.0
    %1526 = vmatprep.subr.mxu0 0.0
    %1527 = vmatpush1.msra.mxu0 0.0
    %1528 = vmatprep.subr.mxu0 0.0
    %1529 = vmatpush1.msra.mxu0 0.0
    %1530 = vmatprep.subr.mxu0 0.0
    %1531 = vmatpush1.msra.mxu0 0.0
    %1532 = vmatprep.subr.mxu0 0.0
    %1533 = vmatpush1.msra.mxu0 0.0
    %1534 = vmatprep.subr.mxu0 0.0
    %1535 = vmatpush1.msra.mxu0 0.0
    %1536 = vmatprep.subr.mxu0 0.0
    %1537 = vmatpush1.msra.mxu0 0.0
    %1538 = vmatprep.subr.mxu0 0.0
    %1539 = vmatpush1.msra.mxu0 0.0
    %1540 = vmatprep.subr.mxu0 0.0
    %1541 = vmatpush1.msra.mxu0 0.0
    %1542 = vmatprep.subr.mxu0 0.0
    %1543 = vmatpush1.msra.mxu0 0.0
    %1544 = vmatprep.subr.mxu0 0.0
    %1545 = vmatpush1.msra.mxu0 0.0
    %1546 = vmatprep.subr.mxu0 0.0
    %1547 = vmatpush1.msra.mxu0 0.0
    %1548 = vmatprep.subr.mxu0 0.0
    %1549 = vmatpush1.msra.mxu0 0.0
    %1550 = vmatprep.subr.mxu0 0.0
    %1551 = vmatpush1.msra.mxu0 0.0
    %1552 = vmatprep.subr.mxu0 0.0
    %1553 = vmatpush1.msra.mxu0 0.0
    %1554 = vmatprep.subr.mxu0 0.0
    %1555 = vmatpush1.msra.mxu0 0.0
    %1556 = vmatprep.subr.mxu0 0.0
    %1557 = vmatpush1.msra.mxu0 0.0
    %1558 = vmatprep.subr.mxu0 0.0
    %1559 = vmatpush1.msra.mxu0 0.0
    %1560 = vmatprep.subr.mxu0 0.0
    %1561 = vmatpush1.msra.mxu0 0.0
    %1562 = vmatprep.subr.mxu0 0.0
    %1563 = vmatpush1.msra.mxu0 0.0
    %1564 = vmatprep.subr.mxu0 0.0
    %1565 = vmatpush1.msra.mxu0 0.0
    %1566 = vmatprep.subr.mxu0 0.0
    %1567 = vmatpush1.msra.mxu0 0.0
    %1568 = vmatprep.subr.mxu0 0.0
    %1569 = vmatpush1.msra.mxu0 0.0
    %1570 = vmatprep.subr.mxu0 0.0
    %1571 = vmatpush1.msra.mxu0 0.0
    %1572 = vmatprep.subr.mxu0 0.0
    %1573 = vmatpush1.msra.mxu0 0.0
    %1574 = vmatprep.subr.mxu0 0.0
    %1575 = vmatpush1.msra.mxu0 0.0
    %1576 = vmatprep.subr.mxu0 0.0
    %1577 = vmatpush1.msra.mxu0 0.0
    %1578 = vmatprep.subr.mxu0 0.0
    %1579 = vmatpush1.msra.mxu0 0.0
    %1580 = vmatprep.mubr.f32.mxu0 0.0
    %1581 = vmatmul.mubr.f32.gmra.mrb[0].mxu0 %v1514
    %v1582 = vpop.f32.mrb[0].mxu0
    %v1583 = vadd.f32 0.0, %v1582
    %v1584 = vpop.f32.mrb[0].mxu0
    %1585 = vdwg.mxu0
    %v1587 = vsel %vm355, %v1583, 0
    %1589 = vmatprep.subr.mxu0 0.0
    %1590 = vmatpush1.msra.mxu0 %v353
    %1591 = vmatprep.subr.mxu0 0.0
    %1592 = vmatpush1.msra.mxu0 0.0
    %1593 = vmatprep.subr.mxu0 0.0
    %1594 = vmatpush1.msra.mxu0 0.0
    %1595 = vmatprep.subr.mxu0 0.0
    %1596 = vmatpush1.msra.mxu0 0.0
    %1597 = vmatprep.subr.mxu0 0.0
    %1598 = vmatpush1.msra.mxu0 0.0
    %1599 = vmatprep.subr.mxu0 0.0
    %1600 = vmatpush1.msra.mxu0 0.0
    %1601 = vmatprep.subr.mxu0 0.0
    %1602 = vmatpush1.msra.mxu0 0.0
    %1603 = vmatprep.subr.mxu0 0.0
    %1604 = vmatpush1.msra.mxu0 0.0
    %1605 = vmatprep.subr.mxu0 0.0
    %1606 = vmatpush1.msra.mxu0 0.0
    %1607 = vmatprep.subr.mxu0 0.0
    %1608 = vmatpush1.msra.mxu0 0.0
    %1609 = vmatprep.subr.mxu0 0.0
    %1610 = vmatpush1.msra.mxu0 0.0
    %1611 = vmatprep.subr.mxu0 0.0
    %1612 = vmatpush1.msra.mxu0 0.0
    %1613 = vmatprep.subr.mxu0 0.0
    %1614 = vmatpush1.msra.mxu0 0.0
    %1615 = vmatprep.subr.mxu0 0.0
    %1616 = vmatpush1.msra.mxu0 0.0
    %1617 = vmatprep.subr.mxu0 0.0
    %1618 = vmatpush1.msra.mxu0 0.0
    %1619 = vmatprep.subr.mxu0 0.0
    %1620 = vmatpush1.msra.mxu0 0.0
    %1621 = vmatprep.subr.mxu0 0.0
    %1622 = vmatpush1.msra.mxu0 0.0
    %1623 = vmatprep.subr.mxu0 0.0
    %1624 = vmatpush1.msra.mxu0 0.0
    %1625 = vmatprep.subr.mxu0 0.0
    %1626 = vmatpush1.msra.mxu0 0.0
    %1627 = vmatprep.subr.mxu0 0.0
    %1628 = vmatpush1.msra.mxu0 0.0
    %1629 = vmatprep.subr.mxu0 0.0
    %1630 = vmatpush1.msra.mxu0 0.0
    %1631 = vmatprep.subr.mxu0 0.0
    %1632 = vmatpush1.msra.mxu0 0.0
    %1633 = vmatprep.subr.mxu0 0.0
    %1634 = vmatpush1.msra.mxu0 0.0
    %1635 = vmatprep.subr.mxu0 0.0
    %1636 = vmatpush1.msra.mxu0 0.0
    %1637 = vmatprep.subr.mxu0 0.0
    %1638 = vmatpush1.msra.mxu0 0.0
    %1639 = vmatprep.subr.mxu0 0.0
    %1640 = vmatpush1.msra.mxu0 0.0
    %1641 = vmatprep.subr.mxu0 0.0
    %1642 = vmatpush1.msra.mxu0 0.0
    %1643 = vmatprep.subr.mxu0 0.0
    %1644 = vmatpush1.msra.mxu0 0.0
    %1645 = vmatprep.subr.mxu0 0.0
    %1646 = vmatpush1.msra.mxu0 0.0
    %1647 = vmatprep.subr.mxu0 0.0
    %1648 = vmatpush1.msra.mxu0 0.0
    %1649 = vmatprep.subr.mxu0 0.0
    %1650 = vmatpush1.msra.mxu0 0.0
    %1651 = vmatprep.subr.mxu0 0.0
    %1652 = vmatpush1.msra.mxu0 0.0
    %1653 = vmatprep.mubr.f32.mxu0 0.0
    %1654 = vmatmul.mubr.f32.gmra.mrb[0].mxu0 %v1587
    %v1655 = vpop.f32.mrb[0].mxu0
    %v1656 = vadd.f32 0.0, %v1655
    %v1657 = vpop.f32.mrb[0].mxu0
    %1658 = vdwg.mxu0
    %v1659 = vadd.f32 %v1509, %v1656
    %v1661 = vsel %vm355, %v1057, 0
    %1663 = vmatprep.subr.mxu0 0.0
    %1664 = vmatpush1.msra.mxu0 %v347
    %1665 = vmatprep.subr.mxu0 0.0
    %1666 = vmatpush1.msra.mxu0 0.0
    %1667 = vmatprep.subr.mxu0 0.0
    %1668 = vmatpush1.msra.mxu0 0.0
    %1669 = vmatprep.subr.mxu0 0.0
    %1670 = vmatpush1.msra.mxu0 0.0
    %1671 = vmatprep.subr.mxu0 0.0
    %1672 = vmatpush1.msra.mxu0 0.0
    %1673 = vmatprep.subr.mxu0 0.0
    %1674 = vmatpush1.msra.mxu0 0.0
    %1675 = vmatprep.subr.mxu0 0.0
    %1676 = vmatpush1.msra.mxu0 0.0
    %1677 = vmatprep.subr.mxu0 0.0
    %1678 = vmatpush1.msra.mxu0 0.0
    %1679 = vmatprep.subr.mxu0 0.0
    %1680 = vmatpush1.msra.mxu0 0.0
    %1681 = vmatprep.subr.mxu0 0.0
    %1682 = vmatpush1.msra.mxu0 0.0
    %1683 = vmatprep.subr.mxu0 0.0
    %1684 = vmatpush1.msra.mxu0 0.0
    %1685 = vmatprep.subr.mxu0 0.0
    %1686 = vmatpush1.msra.mxu0 0.0
    %1687 = vmatprep.subr.mxu0 0.0
    %1688 = vmatpush1.msra.mxu0 0.0
    %1689 = vmatprep.subr.mxu0 0.0
    %1690 = vmatpush1.msra.mxu0 0.0
    %1691 = vmatprep.subr.mxu0 0.0
    %1692 = vmatpush1.msra.mxu0 0.0
    %1693 = vmatprep.subr.mxu0 0.0
    %1694 = vmatpush1.msra.mxu0 0.0
    %1695 = vmatprep.subr.mxu0 0.0
    %1696 = vmatpush1.msra.mxu0 0.0
    %1697 = vmatprep.subr.mxu0 0.0
    %1698 = vmatpush1.msra.mxu0 0.0
    %1699 = vmatprep.subr.mxu0 0.0
    %1700 = vmatpush1.msra.mxu0 0.0
    %1701 = vmatprep.subr.mxu0 0.0
    %1702 = vmatpush1.msra.mxu0 0.0
    %1703 = vmatprep.subr.mxu0 0.0
    %1704 = vmatpush1.msra.mxu0 0.0
    %1705 = vmatprep.subr.mxu0 0.0
    %1706 = vmatpush1.msra.mxu0 0.0
    %1707 = vmatprep.subr.mxu0 0.0
    %1708 = vmatpush1.msra.mxu0 0.0
    %1709 = vmatprep.subr.mxu0 0.0
    %1710 = vmatpush1.msra.mxu0 0.0
    %1711 = vmatprep.subr.mxu0 0.0
    %1712 = vmatpush1.msra.mxu0 0.0
    %1713 = vmatprep.subr.mxu0 0.0
    %1714 = vmatpush1.msra.mxu0 0.0
    %1715 = vmatprep.subr.mxu0 0.0
    %1716 = vmatpush1.msra.mxu0 0.0
    %1717 = vmatprep.subr.mxu0 0.0
    %1718 = vmatpush1.msra.mxu0 0.0
    %1719 = vmatprep.subr.mxu0 0.0
    %1720 = vmatpush1.msra.mxu0 0.0
    %1721 = vmatprep.subr.mxu0 0.0
    %1722 = vmatpush1.msra.mxu0 0.0
    %1723 = vmatprep.subr.mxu0 0.0
    %1724 = vmatpush1.msra.mxu0 0.0
    %1725 = vmatprep.subr.mxu0 0.0
    %1726 = vmatpush1.msra.mxu0 0.0
    %1727 = vmatprep.mubr.f32.mxu0 0.0
    %1728 = vmatmul.mubr.f32.gmra.mrb[0].mxu0 %v1661
    %v1729 = vpop.f32.mrb[0].mxu0
    %v1730 = vadd.f32 0.0, %v1729
    %v1731 = vpop.f32.mrb[0].mxu0
    %1732 = vdwg.mxu0
    %1734 = vrot.lane.b32.xlu0 %v347, 120
    %v1735 = vpop.permute.xlu0 %1734
    %v1738 = vsel %vm355, %v1059, 0
    %1740 = vmatprep.subr.mxu0 0.0
    %1741 = vmatpush1.msra.mxu0 %v1735
    %1742 = vmatprep.subr.mxu0 0.0
    %1743 = vmatpush1.msra.mxu0 0.0
    %1744 = vmatprep.subr.mxu0 0.0
    %1745 = vmatpush1.msra.mxu0 0.0
    %1746 = vmatprep.subr.mxu0 0.0
    %1747 = vmatpush1.msra.mxu0 0.0
    %1748 = vmatprep.subr.mxu0 0.0
    %1749 = vmatpush1.msra.mxu0 0.0
    %1750 = vmatprep.subr.mxu0 0.0
    %1751 = vmatpush1.msra.mxu0 0.0
    %1752 = vmatprep.subr.mxu0 0.0
    %1753 = vmatpush1.msra.mxu0 0.0
    %1754 = vmatprep.subr.mxu0 0.0
    %1755 = vmatpush1.msra.mxu0 0.0
    %1756 = vmatprep.subr.mxu0 0.0
    %1757 = vmatpush1.msra.mxu0 0.0
    %1758 = vmatprep.subr.mxu0 0.0
    %1759 = vmatpush1.msra.mxu0 0.0
    %1760 = vmatprep.subr.mxu0 0.0
    %1761 = vmatpush1.msra.mxu0 0.0
    %1762 = vmatprep.subr.mxu0 0.0
    %1763 = vmatpush1.msra.mxu0 0.0
    %1764 = vmatprep.subr.mxu0 0.0
    %1765 = vmatpush1.msra.mxu0 0.0
    %1766 = vmatprep.subr.mxu0 0.0
    %1767 = vmatpush1.msra.mxu0 0.0
    %1768 = vmatprep.subr.mxu0 0.0
    %1769 = vmatpush1.msra.mxu0 0.0
    %1770 = vmatprep.subr.mxu0 0.0
    %1771 = vmatpush1.msra.mxu0 0.0
    %1772 = vmatprep.subr.mxu0 0.0
    %1773 = vmatpush1.msra.mxu0 0.0
    %1774 = vmatprep.subr.mxu0 0.0
    %1775 = vmatpush1.msra.mxu0 0.0
    %1776 = vmatprep.subr.mxu0 0.0
    %1777 = vmatpush1.msra.mxu0 0.0
    %1778 = vmatprep.subr.mxu0 0.0
    %1779 = vmatpush1.msra.mxu0 0.0
    %1780 = vmatprep.subr.mxu0 0.0
    %1781 = vmatpush1.msra.mxu0 0.0
    %1782 = vmatprep.subr.mxu0 0.0
    %1783 = vmatpush1.msra.mxu0 0.0
    %1784 = vmatprep.subr.mxu0 0.0
    %1785 = vmatpush1.msra.mxu0 0.0
    %1786 = vmatprep.subr.mxu0 0.0
    %1787 = vmatpush1.msra.mxu0 0.0
    %1788 = vmatprep.subr.mxu0 0.0
    %1789 = vmatpush1.msra.mxu0 0.0
    %1790 = vmatprep.subr.mxu0 0.0
    %1791 = vmatpush1.msra.mxu0 0.0
    %1792 = vmatprep.subr.mxu0 0.0
    %1793 = vmatpush1.msra.mxu0 0.0
    %1794 = vmatprep.subr.mxu0 0.0
    %1795 = vmatpush1.msra.mxu0 0.0
    %1796 = vmatprep.subr.mxu0 0.0
    %1797 = vmatpush1.msra.mxu0 0.0
    %1798 = vmatprep.subr.mxu0 0.0
    %1799 = vmatpush1.msra.mxu0 0.0
    %1800 = vmatprep.subr.mxu0 0.0
    %1801 = vmatpush1.msra.mxu0 0.0
    %1802 = vmatprep.subr.mxu0 0.0
    %1803 = vmatpush1.msra.mxu0 0.0
    %1804 = vmatprep.mubr.f32.mxu0 0.0
    %1805 = vmatmul.mubr.f32.gmra.mrb[0].mxu0 %v1738
    %v1806 = vpop.f32.mrb[0].mxu0
    %v1807 = vadd.f32 0.0, %v1806
    %v1808 = vpop.f32.mrb[0].mxu0
    %1809 = vdwg.mxu0
    %v1811 = vsel %vm355, %v1807, 0
    %1813 = vmatprep.subr.mxu0 0.0
    %1814 = vmatpush1.msra.mxu0 %v351
    %1815 = vmatprep.subr.mxu0 0.0
    %1816 = vmatpush1.msra.mxu0 0.0
    %1817 = vmatprep.subr.mxu0 0.0
    %1818 = vmatpush1.msra.mxu0 0.0
    %1819 = vmatprep.subr.mxu0 0.0
    %1820 = vmatpush1.msra.mxu0 0.0
    %1821 = vmatprep.subr.mxu0 0.0
    %1822 = vmatpush1.msra.mxu0 0.0
    %1823 = vmatprep.subr.mxu0 0.0
    %1824 = vmatpush1.msra.mxu0 0.0
    %1825 = vmatprep.subr.mxu0 0.0
    %1826 = vmatpush1.msra.mxu0 0.0
    %1827 = vmatprep.subr.mxu0 0.0
    %1828 = vmatpush1.msra.mxu0 0.0
    %1829 = vmatprep.subr.mxu0 0.0
    %1830 = vmatpush1.msra.mxu0 0.0
    %1831 = vmatprep.subr.mxu0 0.0
    %1832 = vmatpush1.msra.mxu0 0.0
    %1833 = vmatprep.subr.mxu0 0.0
    %1834 = vmatpush1.msra.mxu0 0.0
    %1835 = vmatprep.subr.mxu0 0.0
    %1836 = vmatpush1.msra.mxu0 0.0
    %1837 = vmatprep.subr.mxu0 0.0
    %1838 = vmatpush1.msra.mxu0 0.0
    %1839 = vmatprep.subr.mxu0 0.0
    %1840 = vmatpush1.msra.mxu0 0.0
    %1841 = vmatprep.subr.mxu0 0.0
    %1842 = vmatpush1.msra.mxu0 0.0
    %1843 = vmatprep.subr.mxu0 0.0
    %1844 = vmatpush1.msra.mxu0 0.0
    %1845 = vmatprep.subr.mxu0 0.0
    %1846 = vmatpush1.msra.mxu0 0.0
    %1847 = vmatprep.subr.mxu0 0.0
    %1848 = vmatpush1.msra.mxu0 0.0
    %1849 = vmatprep.subr.mxu0 0.0
    %1850 = vmatpush1.msra.mxu0 0.0
    %1851 = vmatprep.subr.mxu0 0.0
    %1852 = vmatpush1.msra.mxu0 0.0
    %1853 = vmatprep.subr.mxu0 0.0
    %1854 = vmatpush1.msra.mxu0 0.0
    %1855 = vmatprep.subr.mxu0 0.0
    %1856 = vmatpush1.msra.mxu0 0.0
    %1857 = vmatprep.subr.mxu0 0.0
    %1858 = vmatpush1.msra.mxu0 0.0
    %1859 = vmatprep.subr.mxu0 0.0
    %1860 = vmatpush1.msra.mxu0 0.0
    %1861 = vmatprep.subr.mxu0 0.0
    %1862 = vmatpush1.msra.mxu0 0.0
    %1863 = vmatprep.subr.mxu0 0.0
    %1864 = vmatpush1.msra.mxu0 0.0
    %1865 = vmatprep.subr.mxu0 0.0
    %1866 = vmatpush1.msra.mxu0 0.0
    %1867 = vmatprep.subr.mxu0 0.0
    %1868 = vmatpush1.msra.mxu0 0.0
    %1869 = vmatprep.subr.mxu0 0.0
    %1870 = vmatpush1.msra.mxu0 0.0
    %1871 = vmatprep.subr.mxu0 0.0
    %1872 = vmatpush1.msra.mxu0 0.0
    %1873 = vmatprep.subr.mxu0 0.0
    %1874 = vmatpush1.msra.mxu0 0.0
    %1875 = vmatprep.subr.mxu0 0.0
    %1876 = vmatpush1.msra.mxu0 0.0
    %1877 = vmatprep.mubr.f32.mxu0 0.0
    %1878 = vmatmul.mubr.f32.gmra.mrb[0].mxu0 %v1811
    %v1879 = vpop.f32.mrb[0].mxu0
    %v1880 = vadd.f32 0.0, %v1879
    %v1881 = vpop.f32.mrb[0].mxu0
    %1882 = vdwg.mxu0
    %v1884 = vsel %vm355, %v1730, 0
    %1886 = vmatprep.subr.mxu0 0.0
    %1887 = vmatpush1.msra.mxu0 %v350
    %1888 = vmatprep.subr.mxu0 0.0
    %1889 = vmatpush1.msra.mxu0 0.0
    %1890 = vmatprep.subr.mxu0 0.0
    %1891 = vmatpush1.msra.mxu0 0.0
    %1892 = vmatprep.subr.mxu0 0.0
    %1893 = vmatpush1.msra.mxu0 0.0
    %1894 = vmatprep.subr.mxu0 0.0
    %1895 = vmatpush1.msra.mxu0 0.0
    %1896 = vmatprep.subr.mxu0 0.0
    %1897 = vmatpush1.msra.mxu0 0.0
    %1898 = vmatprep.subr.mxu0 0.0
    %1899 = vmatpush1.msra.mxu0 0.0
    %1900 = vmatprep.subr.mxu0 0.0
    %1901 = vmatpush1.msra.mxu0 0.0
    %1902 = vmatprep.subr.mxu0 0.0
    %1903 = vmatpush1.msra.mxu0 0.0
    %1904 = vmatprep.subr.mxu0 0.0
    %1905 = vmatpush1.msra.mxu0 0.0
    %1906 = vmatprep.subr.mxu0 0.0
    %1907 = vmatpush1.msra.mxu0 0.0
    %1908 = vmatprep.subr.mxu0 0.0
    %1909 = vmatpush1.msra.mxu0 0.0
    %1910 = vmatprep.subr.mxu0 0.0
    %1911 = vmatpush1.msra.mxu0 0.0
    %1912 = vmatprep.subr.mxu0 0.0
    %1913 = vmatpush1.msra.mxu0 0.0
    %1914 = vmatprep.subr.mxu0 0.0
    %1915 = vmatpush1.msra.mxu0 0.0
    %1916 = vmatprep.subr.mxu0 0.0
    %1917 = vmatpush1.msra.mxu0 0.0
    %1918 = vmatprep.subr.mxu0 0.0
    %1919 = vmatpush1.msra.mxu0 0.0
    %1920 = vmatprep.subr.mxu0 0.0
    %1921 = vmatpush1.msra.mxu0 0.0
    %1922 = vmatprep.subr.mxu0 0.0
    %1923 = vmatpush1.msra.mxu0 0.0
    %1924 = vmatprep.subr.mxu0 0.0
    %1925 = vmatpush1.msra.mxu0 0.0
    %1926 = vmatprep.subr.mxu0 0.0
    %1927 = vmatpush1.msra.mxu0 0.0
    %1928 = vmatprep.subr.mxu0 0.0
    %1929 = vmatpush1.msra.mxu0 0.0
    %1930 = vmatprep.subr.mxu0 0.0
    %1931 = vmatpush1.msra.mxu0 0.0
    %1932 = vmatprep.subr.mxu0 0.0
    %1933 = vmatpush1.msra.mxu0 0.0
    %1934 = vmatprep.subr.mxu0 0.0
    %1935 = vmatpush1.msra.mxu0 0.0
    %1936 = vmatprep.subr.mxu0 0.0
    %1937 = vmatpush1.msra.mxu0 0.0
    %1938 = vmatprep.subr.mxu0 0.0
    %1939 = vmatpush1.msra.mxu0 0.0
    %1940 = vmatprep.subr.mxu0 0.0
    %1941 = vmatpush1.msra.mxu0 0.0
    %1942 = vmatprep.subr.mxu0 0.0
    %1943 = vmatpush1.msra.mxu0 0.0
    %1944 = vmatprep.subr.mxu0 0.0
    %1945 = vmatpush1.msra.mxu0 0.0
    %1946 = vmatprep.subr.mxu0 0.0
    %1947 = vmatpush1.msra.mxu0 0.0
    %1948 = vmatprep.subr.mxu0 0.0
    %1949 = vmatpush1.msra.mxu0 0.0
    %1950 = vmatprep.mubr.f32.mxu0 0.0
    %1951 = vmatmul.mubr.f32.gmra.mrb[0].mxu0 %v1884
    %v1952 = vpop.f32.mrb[0].mxu0
    %v1953 = vadd.f32 %v1880, %v1952
    %v1954 = vpop.f32.mrb[0].mxu0
    %1955 = vdwg.mxu0
    %1956 = vrot.lane.b32.xlu0 %v347, 112
    %v1957 = vpop.permute.xlu0 %1956
    %v1960 = vsel %vm355, %v1061, 0
    %1962 = vmatprep.subr.mxu0 0.0
    %1963 = vmatpush1.msra.mxu0 %v1957
    %1964 = vmatprep.subr.mxu0 0.0
    %1965 = vmatpush1.msra.mxu0 0.0
    %1966 = vmatprep.subr.mxu0 0.0
    %1967 = vmatpush1.msra.mxu0 0.0
    %1968 = vmatprep.subr.mxu0 0.0
    %1969 = vmatpush1.msra.mxu0 0.0
    %1970 = vmatprep.subr.mxu0 0.0
    %1971 = vmatpush1.msra.mxu0 0.0
    %1972 = vmatprep.subr.mxu0 0.0
    %1973 = vmatpush1.msra.mxu0 0.0
    %1974 = vmatprep.subr.mxu0 0.0
    %1975 = vmatpush1.msra.mxu0 0.0
    %1976 = vmatprep.subr.mxu0 0.0
    %1977 = vmatpush1.msra.mxu0 0.0
    %1978 = vmatprep.subr.mxu0 0.0
    %1979 = vmatpush1.msra.mxu0 0.0
    %1980 = vmatprep.subr.mxu0 0.0
    %1981 = vmatpush1.msra.mxu0 0.0
    %1982 = vmatprep.subr.mxu0 0.0
    %1983 = vmatpush1.msra.mxu0 0.0
    %1984 = vmatprep.subr.mxu0 0.0
    %1985 = vmatpush1.msra.mxu0 0.0
    %1986 = vmatprep.subr.mxu0 0.0
    %1987 = vmatpush1.msra.mxu0 0.0
    %1988 = vmatprep.subr.mxu0 0.0
    %1989 = vmatpush1.msra.mxu0 0.0
    %1990 = vmatprep.subr.mxu0 0.0
    %1991 = vmatpush1.msra.mxu0 0.0
    %1992 = vmatprep.subr.mxu0 0.0
    %1993 = vmatpush1.msra.mxu0 0.0
    %1994 = vmatprep.subr.mxu0 0.0
    %1995 = vmatpush1.msra.mxu0 0.0
    %1996 = vmatprep.subr.mxu0 0.0
    %1997 = vmatpush1.msra.mxu0 0.0
    %1998 = vmatprep.subr.mxu0 0.0
    %1999 = vmatpush1.msra.mxu0 0.0
    %2000 = vmatprep.subr.mxu0 0.0
    %2001 = vmatpush1.msra.mxu0 0.0
    %2002 = vmatprep.subr.mxu0 0.0
    %2003 = vmatpush1.msra.mxu0 0.0
    %2004 = vmatprep.subr.mxu0 0.0
    %2005 = vmatpush1.msra.mxu0 0.0
    %2006 = vmatprep.subr.mxu0 0.0
    %2007 = vmatpush1.msra.mxu0 0.0
    %2008 = vmatprep.subr.mxu0 0.0
    %2009 = vmatpush1.msra.mxu0 0.0
    %2010 = vmatprep.subr.mxu0 0.0
    %2011 = vmatpush1.msra.mxu0 0.0
    %2012 = vmatprep.subr.mxu0 0.0
    %2013 = vmatpush1.msra.mxu0 0.0
    %2014 = vmatprep.subr.mxu0 0.0
    %2015 = vmatpush1.msra.mxu0 0.0
    %2016 = vmatprep.subr.mxu0 0.0
    %2017 = vmatpush1.msra.mxu0 0.0
    %2018 = vmatprep.subr.mxu0 0.0
    %2019 = vmatpush1.msra.mxu0 0.0
    %2020 = vmatprep.subr.mxu0 0.0
    %2021 = vmatpush1.msra.mxu0 0.0
    %2022 = vmatprep.subr.mxu0 0.0
    %2023 = vmatpush1.msra.mxu0 0.0
    %2024 = vmatprep.subr.mxu0 0.0
    %2025 = vmatpush1.msra.mxu0 0.0
    %2026 = vmatprep.mubr.f32.mxu0 0.0
    %2027 = vmatmul.mubr.f32.gmra.mrb[0].mxu0 %v1960
    %v2028 = vpop.f32.mrb[0].mxu0
    %v2029 = vadd.f32 0.0, %v2028
    %v2030 = vpop.f32.mrb[0].mxu0
    %2031 = vdwg.mxu0
    %v2033 = vsel %vm355, %v2029, 0
    %2035 = vmatprep.subr.mxu0 0.0
    %2036 = vmatpush1.msra.mxu0 %v352
    %2037 = vmatprep.subr.mxu0 0.0
    %2038 = vmatpush1.msra.mxu0 0.0
    %2039 = vmatprep.subr.mxu0 0.0
    %2040 = vmatpush1.msra.mxu0 0.0
    %2041 = vmatprep.subr.mxu0 0.0
    %2042 = vmatpush1.msra.mxu0 0.0
    %2043 = vmatprep.subr.mxu0 0.0
    %2044 = vmatpush1.msra.mxu0 0.0
    %2045 = vmatprep.subr.mxu0 0.0
    %2046 = vmatpush1.msra.mxu0 0.0
    %2047 = vmatprep.subr.mxu0 0.0
    %2048 = vmatpush1.msra.mxu0 0.0
    %2049 = vmatprep.subr.mxu0 0.0
    %2050 = vmatpush1.msra.mxu0 0.0
    %2051 = vmatprep.subr.mxu0 0.0
    %2052 = vmatpush1.msra.mxu0 0.0
    %2053 = vmatprep.subr.mxu0 0.0
    %2054 = vmatpush1.msra.mxu0 0.0
    %2055 = vmatprep.subr.mxu0 0.0
    %2056 = vmatpush1.msra.mxu0 0.0
    %2057 = vmatprep.subr.mxu0 0.0
    %2058 = vmatpush1.msra.mxu0 0.0
    %2059 = vmatprep.subr.mxu0 0.0
    %2060 = vmatpush1.msra.mxu0 0.0
    %2061 = vmatprep.subr.mxu0 0.0
    %2062 = vmatpush1.msra.mxu0 0.0
    %2063 = vmatprep.subr.mxu0 0.0
    %2064 = vmatpush1.msra.mxu0 0.0
    %2065 = vmatprep.subr.mxu0 0.0
    %2066 = vmatpush1.msra.mxu0 0.0
    %2067 = vmatprep.subr.mxu0 0.0
    %2068 = vmatpush1.msra.mxu0 0.0
    %2069 = vmatprep.subr.mxu0 0.0
    %2070 = vmatpush1.msra.mxu0 0.0
    %2071 = vmatprep.subr.mxu0 0.0
    %2072 = vmatpush1.msra.mxu0 0.0
    %2073 = vmatprep.subr.mxu0 0.0
    %2074 = vmatpush1.msra.mxu0 0.0
    %2075 = vmatprep.subr.mxu0 0.0
    %2076 = vmatpush1.msra.mxu0 0.0
    %2077 = vmatprep.subr.mxu0 0.0
    %2078 = vmatpush1.msra.mxu0 0.0
    %2079 = vmatprep.subr.mxu0 0.0
    %2080 = vmatpush1.msra.mxu0 0.0
    %2081 = vmatprep.subr.mxu0 0.0
    %2082 = vmatpush1.msra.mxu0 0.0
    %2083 = vmatprep.subr.mxu0 0.0
    %2084 = vmatpush1.msra.mxu0 0.0
    %2085 = vmatprep.subr.mxu0 0.0
    %2086 = vmatpush1.msra.mxu0 0.0
    %2087 = vmatprep.subr.mxu0 0.0
    %2088 = vmatpush1.msra.mxu0 0.0
    %2089 = vmatprep.subr.mxu0 0.0
    %2090 = vmatpush1.msra.mxu0 0.0
    %2091 = vmatprep.subr.mxu0 0.0
    %2092 = vmatpush1.msra.mxu0 0.0
    %2093 = vmatprep.subr.mxu0 0.0
    %2094 = vmatpush1.msra.mxu0 0.0
    %2095 = vmatprep.subr.mxu0 0.0
    %2096 = vmatpush1.msra.mxu0 0.0
    %2097 = vmatprep.subr.mxu0 0.0
    %2098 = vmatpush1.msra.mxu0 0.0
    %2099 = vmatprep.mubr.f32.mxu0 0.0
    %2100 = vmatmul.mubr.f32.gmra.mrb[0].mxu0 %v2033
    %v2101 = vpop.f32.mrb[0].mxu0
    %v2102 = vadd.f32 0.0, %v2101
    %v2103 = vpop.f32.mrb[0].mxu0
    %2104 = vdwg.mxu0
    %v2105 = vadd.f32 %v1953, %v2102
    %2106 = vrot.lane.b32.xlu0 %v347, 104
    %v2107 = vpop.permute.xlu0 %2106
    %v2110 = vsel %vm355, %v1063, 0
    %2112 = vmatprep.subr.mxu0 0.0
    %2113 = vmatpush1.msra.mxu0 %v2107
    %2114 = vmatprep.subr.mxu0 0.0
    %2115 = vmatpush1.msra.mxu0 0.0
    %2116 = vmatprep.subr.mxu0 0.0
    %2117 = vmatpush1.msra.mxu0 0.0
    %2118 = vmatprep.subr.mxu0 0.0
    %2119 = vmatpush1.msra.mxu0 0.0
    %2120 = vmatprep.subr.mxu0 0.0
    %2121 = vmatpush1.msra.mxu0 0.0
    %2122 = vmatprep.subr.mxu0 0.0
    %2123 = vmatpush1.msra.mxu0 0.0
    %2124 = vmatprep.subr.mxu0 0.0
    %2125 = vmatpush1.msra.mxu0 0.0
    %2126 = vmatprep.subr.mxu0 0.0
    %2127 = vmatpush1.msra.mxu0 0.0
    %2128 = vmatprep.subr.mxu0 0.0
    %2129 = vmatpush1.msra.mxu0 0.0
    %2130 = vmatprep.subr.mxu0 0.0
    %2131 = vmatpush1.msra.mxu0 0.0
    %2132 = vmatprep.subr.mxu0 0.0
    %2133 = vmatpush1.msra.mxu0 0.0
    %2134 = vmatprep.subr.mxu0 0.0
    %2135 = vmatpush1.msra.mxu0 0.0
    %2136 = vmatprep.subr.mxu0 0.0
    %2137 = vmatpush1.msra.mxu0 0.0
    %2138 = vmatprep.subr.mxu0 0.0
    %2139 = vmatpush1.msra.mxu0 0.0
    %2140 = vmatprep.subr.mxu0 0.0
    %2141 = vmatpush1.msra.mxu0 0.0
    %2142 = vmatprep.subr.mxu0 0.0
    %2143 = vmatpush1.msra.mxu0 0.0
    %2144 = vmatprep.subr.mxu0 0.0
    %2145 = vmatpush1.msra.mxu0 0.0
    %2146 = vmatprep.subr.mxu0 0.0
    %2147 = vmatpush1.msra.mxu0 0.0
    %2148 = vmatprep.subr.mxu0 0.0
    %2149 = vmatpush1.msra.mxu0 0.0
    %2150 = vmatprep.subr.mxu0 0.0
    %2151 = vmatpush1.msra.mxu0 0.0
    %2152 = vmatprep.subr.mxu0 0.0
    %2153 = vmatpush1.msra.mxu0 0.0
    %2154 = vmatprep.subr.mxu0 0.0
    %2155 = vmatpush1.msra.mxu0 0.0
    %2156 = vmatprep.subr.mxu0 0.0
    %2157 = vmatpush1.msra.mxu0 0.0
    %2158 = vmatprep.subr.mxu0 0.0
    %2159 = vmatpush1.msra.mxu0 0.0
    %2160 = vmatprep.subr.mxu0 0.0
    %2161 = vmatpush1.msra.mxu0 0.0
    %2162 = vmatprep.subr.mxu0 0.0
    %2163 = vmatpush1.msra.mxu0 0.0
    %2164 = vmatprep.subr.mxu0 0.0
    %2165 = vmatpush1.msra.mxu0 0.0
    %2166 = vmatprep.subr.mxu0 0.0
    %2167 = vmatpush1.msra.mxu0 0.0
    %2168 = vmatprep.subr.mxu0 0.0
    %2169 = vmatpush1.msra.mxu0 0.0
    %2170 = vmatprep.subr.mxu0 0.0
    %2171 = vmatpush1.msra.mxu0 0.0
    %2172 = vmatprep.subr.mxu0 0.0
    %2173 = vmatpush1.msra.mxu0 0.0
    %2174 = vmatprep.subr.mxu0 0.0
    %2175 = vmatpush1.msra.mxu0 0.0
    %2176 = vmatprep.mubr.f32.mxu0 0.0
    %2177 = vmatmul.mubr.f32.gmra.mrb[0].mxu0 %v2110
    %v2178 = vpop.f32.mrb[0].mxu0
    %v2179 = vadd.f32 0.0, %v2178
    %v2180 = vpop.f32.mrb[0].mxu0
    %2181 = vdwg.mxu0
    %v2183 = vsel %vm355, %v2179, 0
    %2185 = vmatprep.subr.mxu0 0.0
    %2186 = vmatpush1.msra.mxu0 %v353
    %2187 = vmatprep.subr.mxu0 0.0
    %2188 = vmatpush1.msra.mxu0 0.0
    %2189 = vmatprep.subr.mxu0 0.0
    %2190 = vmatpush1.msra.mxu0 0.0
    %2191 = vmatprep.subr.mxu0 0.0
    %2192 = vmatpush1.msra.mxu0 0.0
    %2193 = vmatprep.subr.mxu0 0.0
    %2194 = vmatpush1.msra.mxu0 0.0
    %2195 = vmatprep.subr.mxu0 0.0
    %2196 = vmatpush1.msra.mxu0 0.0
    %2197 = vmatprep.subr.mxu0 0.0
    %2198 = vmatpush1.msra.mxu0 0.0
    %2199 = vmatprep.subr.mxu0 0.0
    %2200 = vmatpush1.msra.mxu0 0.0
    %2201 = vmatprep.subr.mxu0 0.0
    %2202 = vmatpush1.msra.mxu0 0.0
    %2203 = vmatprep.subr.mxu0 0.0
    %2204 = vmatpush1.msra.mxu0 0.0
    %2205 = vmatprep.subr.mxu0 0.0
    %2206 = vmatpush1.msra.mxu0 0.0
    %2207 = vmatprep.subr.mxu0 0.0
    %2208 = vmatpush1.msra.mxu0 0.0
    %2209 = vmatprep.subr.mxu0 0.0
    %2210 = vmatpush1.msra.mxu0 0.0
    %2211 = vmatprep.subr.mxu0 0.0
    %2212 = vmatpush1.msra.mxu0 0.0
    %2213 = vmatprep.subr.mxu0 0.0
    %2214 = vmatpush1.msra.mxu0 0.0
    %2215 = vmatprep.subr.mxu0 0.0
    %2216 = vmatpush1.msra.mxu0 0.0
    %2217 = vmatprep.subr.mxu0 0.0
    %2218 = vmatpush1.msra.mxu0 0.0
    %2219 = vmatprep.subr.mxu0 0.0
    %2220 = vmatpush1.msra.mxu0 0.0
    %2221 = vmatprep.subr.mxu0 0.0
    %2222 = vmatpush1.msra.mxu0 0.0
    %2223 = vmatprep.subr.mxu0 0.0
    %2224 = vmatpush1.msra.mxu0 0.0
    %2225 = vmatprep.subr.mxu0 0.0
    %2226 = vmatpush1.msra.mxu0 0.0
    %2227 = vmatprep.subr.mxu0 0.0
    %2228 = vmatpush1.msra.mxu0 0.0
    %2229 = vmatprep.subr.mxu0 0.0
    %2230 = vmatpush1.msra.mxu0 0.0
    %2231 = vmatprep.subr.mxu0 0.0
    %2232 = vmatpush1.msra.mxu0 0.0
    %2233 = vmatprep.subr.mxu0 0.0
    %2234 = vmatpush1.msra.mxu0 0.0
    %2235 = vmatprep.subr.mxu0 0.0
    %2236 = vmatpush1.msra.mxu0 0.0
    %2237 = vmatprep.subr.mxu0 0.0
    %2238 = vmatpush1.msra.mxu0 0.0
    %2239 = vmatprep.subr.mxu0 0.0
    %2240 = vmatpush1.msra.mxu0 0.0
    %2241 = vmatprep.subr.mxu0 0.0
    %2242 = vmatpush1.msra.mxu0 0.0
    %2243 = vmatprep.subr.mxu0 0.0
    %2244 = vmatpush1.msra.mxu0 0.0
    %2245 = vmatprep.subr.mxu0 0.0
    %2246 = vmatpush1.msra.mxu0 0.0
    %2247 = vmatprep.subr.mxu0 0.0
    %2248 = vmatpush1.msra.mxu0 0.0
    %2249 = vmatprep.mubr.f32.mxu0 0.0
    %2250 = vmatmul.mubr.f32.gmra.mrb[0].mxu0 %v2183
    %v2251 = vpop.f32.mrb[0].mxu0
    %v2252 = vadd.f32 0.0, %v2251
    %v2253 = vpop.f32.mrb[0].mxu0
    %2254 = vdwg.mxu0
    %v2255 = vadd.f32 %v2105, %v2252
    %v2256 = vlaneseq
    %v2257 = vshrl.u32 %v2256, 7
    %v2258 = vsub.s32 0, %v2257
    %v2259 = vrot.slane %v354, %v2258
    %v2260 = vadd.f32 %v1659, %v2259
    %v2261 = vadd.f32 %v2255, %v2259
    %v2262 = vld [vmem:[#allocation8 + $0xe6] sm:$0x1]
    %v2263 = vld [vmem:[#allocation8 + $0xe7] sm:$0x1]
    %v2264 = vadd.f32 %v73, %v2260
    %v2265 = vadd.f32 %v74, %v2261
    %v2266 = vsel %vm98, %v2264, 0.0
    %2267 = vadd.xlane.f32.xlu0 %v2266
    %v2268 = vpop.xlane.xlu0 %2267
    %v2269 = vsel %vm98, %v2265, 0.0
    %2270 = vadd.xlane.f32.xlu0 %v2269
    %v2271 = vpop.xlane.xlu0 %2270
    %v2272 = vrcp.pop 32.0
    %v2273 = vmul.f32 %v2268, %v2272
    %v2274 = vmul.f32 %v2271, %v2272
    %v2275 = vsub.f32 %v2264, %v2273
    %v2276 = vsub.f32 %v2265, %v2274
    %v2277 = vmul.f32 %v2275, %v2275
    %v2278 = vmul.f32 %v2276, %v2276
    %v2279 = vsel %vm98, %v2277, 0.0
    %2280 = vadd.xlane.f32.xlu0 %v2279
    %v2281 = vpop.xlane.xlu0 %2280
    %v2282 = vsel %vm98, %v2278, 0.0
    %2283 = vadd.xlane.f32.xlu0 %v2282
    %v2284 = vpop.xlane.xlu0 %2283
    %v2285 = vmul.f32 %v2281, %v2272
    %v2286 = vmul.f32 %v2284, %v2272
    %v2287 = vadd.f32 %v2285, 1e-05
    %v2288 = vadd.f32 %v2286, 1e-05
    %v2289 = vrsqrt.pop %v2287
    %v2290 = vrsqrt.pop %v2288
    %v2291 = vmul.f32 %v2275, %v2289
    %v2292 = vmul.f32 %v2276, %v2290
    %v2293 = vlaneseq
    %v2294 = vshrl.u32 %v2293, 7
    %v2295 = vsub.s32 0, %v2294
    %v2296 = vrot.slane %v2262, %v2295
    %v2297 = vmul.f32 %v2291, %v2296
    %v2298 = vmul.f32 %v2292, %v2296
    %v2299 = vlaneseq
    %v2300 = vshrl.u32 %v2299, 7
    %v2301 = vsub.s32 0, %v2300
    %v2302 = vrot.slane %v2263, %v2301
    %v2303 = vadd.f32 %v2297, %v2302
    %v2304 = vadd.f32 %v2298, %v2302
    %v2305 = vld [vmem:[#allocation8 + $0x80] sm:$0xff]
    %v2306 = vld [vmem:[#allocation8 + $0x88] sm:$0xff]
    %v2307 = vld [vmem:[#allocation8 + $0x90] sm:$0xff]
    %v2308 = vld [vmem:[#allocation8 + $0x98] sm:$0xff]
    %v2309 = vld [vmem:[#allocation8 + $0xe4] sm:$0x1]
    %v2310 = vld [vmem:[#allocation8 + $0xa0] sm:$0xff]
    %v2311 = vld [vmem:[#allocation8 + $0xa8] sm:$0xff]
    %v2312 = vld [vmem:[#allocation8 + $0xb0] sm:$0xff]
    %v2313 = vld [vmem:[#allocation8 + $0xb8] sm:$0xff]
    %v2314 = vld [vmem:[#allocation8 + $0xc0] sm:$0xff]
    %v2315 = vld [vmem:[#allocation8 + $0xc8] sm:$0xff]
    %v2316 = vld [vmem:[#allocation8 + $0xd0] sm:$0xff]
    %v2317 = vld [vmem:[#allocation8 + $0xd8] sm:$0xff]
    %v2318 = vld [vmem:[#allocation8 + $0xe5] sm:$0x1]
    %v2319 = vlaneseq
    %v2320 = vshrl.u32 %v2319, 7
    %v2321 = vsub.s32 0, %v2320
    %v2322 = vrot.slane %v2309, %v2321
    %v2324 = vsel %vm98, %v2303, 0
    %v2327 = vsel %vm98, %v2304, 0
    %2329 = vmatprep.subr.mxu0 0.0
    %2330 = vmatpush1.msra.mxu0 %v2305
    %2331 = vmatprep.subr.mxu0 0.0
    %2332 = vmatpush1.msra.mxu0 %v2306
    %2333 = vmatprep.subr.mxu0 0.0
    %2334 = vmatpush1.msra.mxu0 %v2307
    %2335 = vmatprep.subr.mxu0 0.0
    %2336 = vmatpush1.msra.mxu0 %v2308
    %2337 = vmatprep.subr.mxu0 0.0
    %2338 = vmatpush1.msra.mxu0 0.0
    %2339 = vmatprep.subr.mxu0 0.0
    %2340 = vmatpush1.msra.mxu0 0.0
    %2341 = vmatprep.subr.mxu0 0.0
    %2342 = vmatpush1.msra.mxu0 0.0
    %2343 = vmatprep.subr.mxu0 0.0
    %2344 = vmatpush1.msra.mxu0 0.0
    %2345 = vmatprep.subr.mxu0 0.0
    %2346 = vmatpush1.msra.mxu0 0.0
    %2347 = vmatprep.subr.mxu0 0.0
    %2348 = vmatpush1.msra.mxu0 0.0
    %2349 = vmatprep.subr.mxu0 0.0
    %2350 = vmatpush1.msra.mxu0 0.0
    %2351 = vmatprep.subr.mxu0 0.0
    %2352 = vmatpush1.msra.mxu0 0.0
    %2353 = vmatprep.subr.mxu0 0.0
    %2354 = vmatpush1.msra.mxu0 0.0
    %2355 = vmatprep.subr.mxu0 0.0
    %2356 = vmatpush1.msra.mxu0 0.0
    %2357 = vmatprep.subr.mxu0 0.0
    %2358 = vmatpush1.msra.mxu0 0.0
    %2359 = vmatprep.subr.mxu0 0.0
    %2360 = vmatpush1.msra.mxu0 0.0
    %2361 = vmatprep.subr.mxu0 0.0
    %2362 = vmatpush1.msra.mxu0 0.0
    %2363 = vmatprep.subr.mxu0 0.0
    %2364 = vmatpush1.msra.mxu0 0.0
    %2365 = vmatprep.subr.mxu0 0.0
    %2366 = vmatpush1.msra.mxu0 0.0
    %2367 = vmatprep.subr.mxu0 0.0
    %2368 = vmatpush1.msra.mxu0 0.0
    %2369 = vmatprep.subr.mxu0 0.0
    %2370 = vmatpush1.msra.mxu0 0.0
    %2371 = vmatprep.subr.mxu0 0.0
    %2372 = vmatpush1.msra.mxu0 0.0
    %2373 = vmatprep.subr.mxu0 0.0
    %2374 = vmatpush1.msra.mxu0 0.0
    %2375 = vmatprep.subr.mxu0 0.0
    %2376 = vmatpush1.msra.mxu0 0.0
    %2377 = vmatprep.subr.mxu0 0.0
    %2378 = vmatpush1.msra.mxu0 0.0
    %2379 = vmatprep.subr.mxu0 0.0
    %2380 = vmatpush1.msra.mxu0 0.0
    %2381 = vmatprep.subr.mxu0 0.0
    %2382 = vmatpush1.msra.mxu0 0.0
    %2383 = vmatprep.subr.mxu0 0.0
    %2384 = vmatpush1.msra.mxu0 0.0
    %2385 = vmatprep.subr.mxu0 0.0
    %2386 = vmatpush1.msra.mxu0 0.0
    %2387 = vmatprep.subr.mxu0 0.0
    %2388 = vmatpush1.msra.mxu0 0.0
    %2389 = vmatprep.subr.mxu0 0.0
    %2390 = vmatpush1.msra.mxu0 0.0
    %2391 = vmatprep.subr.mxu0 0.0
    %2392 = vmatpush1.msra.mxu0 0.0
    %2393 = vmatprep.mubr.f32.mxu0 0.0
    %2394 = vmatmul.mubr.f32.gmra.mrb[0].mxu0 %v2324
    %v2395 = vpop.f32.mrb[0].mxu0
    %v2396 = vadd.f32 %v2322, %v2395
    %v2397 = vpop.f32.mrb[0].mxu0
    %2398 = vmatprep.mubr.f32.mxu0 0.0
    %2399 = vmatmul.mubr.f32.gmra.mrb[0].mxu0 %v2327
    %v2400 = vpop.f32.mrb[0].mxu0
    %v2401 = vadd.f32 %v2322, %v2400
    %v2402 = vpop.f32.mrb[0].mxu0
    %2403 = vdwg.mxu0
    %v2404 = vmax.f32 %v2396, 0.0
    %v2405 = vmax.f32 %v2401, 0.0
    %v2406 = vlaneseq
    %v2407 = vshrl.u32 %v2406, 7
    %v2408 = vsub.s32 0, %v2407
    %v2409 = vrot.slane %v2318, %v2408
    %vm2410 = vcmask 523264
    %v2412 = vsel %vm2410, %v2404, 0
    %v2415 = vsel %vm2410, %v2405, 0
    %2417 = vmatprep.subr.mxu0 0.0
    %2418 = vmatpush1.msra.mxu0 %v2310
    %2419 = vmatprep.subr.mxu0 0.0
    %2420 = vmatpush1.msra.mxu0 %v2311
    %2421 = vmatprep.subr.mxu0 0.0
    %2422 = vmatpush1.msra.mxu0 %v2312
    %2423 = vmatprep.subr.mxu0 0.0
    %2424 = vmatpush1.msra.mxu0 %v2313
    %2425 = vmatprep.subr.mxu0 0.0
    %2426 = vmatpush1.msra.mxu0 %v2314
    %2427 = vmatprep.subr.mxu0 0.0
    %2428 = vmatpush1.msra.mxu0 %v2315
    %2429 = vmatprep.subr.mxu0 0.0
    %2430 = vmatpush1.msra.mxu0 %v2316
    %2431 = vmatprep.subr.mxu0 0.0
    %2432 = vmatpush1.msra.mxu0 %v2317
    %2433 = vmatprep.subr.mxu0 0.0
    %2434 = vmatpush1.msra.mxu0 0.0
    %2435 = vmatprep.subr.mxu0 0.0
    %2436 = vmatpush1.msra.mxu0 0.0
    %2437 = vmatprep.subr.mxu0 0.0
    %2438 = vmatpush1.msra.mxu0 0.0
    %2439 = vmatprep.subr.mxu0 0.0
    %2440 = vmatpush1.msra.mxu0 0.0
    %2441 = vmatprep.subr.mxu0 0.0
    %2442 = vmatpush1.msra.mxu0 0.0
    %2443 = vmatprep.subr.mxu0 0.0
    %2444 = vmatpush1.msra.mxu0 0.0
    %2445 = vmatprep.subr.mxu0 0.0
    %2446 = vmatpush1.msra.mxu0 0.0
    %2447 = vmatprep.subr.mxu0 0.0
    %2448 = vmatpush1.msra.mxu0 0.0
    %2449 = vmatprep.subr.mxu0 0.0
    %2450 = vmatpush1.msra.mxu0 0.0
    %2451 = vmatprep.subr.mxu0 0.0
    %2452 = vmatpush1.msra.mxu0 0.0
    %2453 = vmatprep.subr.mxu0 0.0
    %2454 = vmatpush1.msra.mxu0 0.0
    %2455 = vmatprep.subr.mxu0 0.0
    %2456 = vmatpush1.msra.mxu0 0.0
    %2457 = vmatprep.subr.mxu0 0.0
    %2458 = vmatpush1.msra.mxu0 0.0
    %2459 = vmatprep.subr.mxu0 0.0
    %2460 = vmatpush1.msra.mxu0 0.0
    %2461 = vmatprep.subr.mxu0 0.0
    %2462 = vmatpush1.msra.mxu0 0.0
    %2463 = vmatprep.subr.mxu0 0.0
    %2464 = vmatpush1.msra.mxu0 0.0
    %2465 = vmatprep.subr.mxu0 0.0
    %2466 = vmatpush1.msra.mxu0 0.0
    %2467 = vmatprep.subr.mxu0 0.0
    %2468 = vmatpush1.msra.mxu0 0.0
    %2469 = vmatprep.subr.mxu0 0.0
    %2470 = vmatpush1.msra.mxu0 0.0
    %2471 = vmatprep.subr.mxu0 0.0
    %2472 = vmatpush1.msra.mxu0 0.0
    %2473 = vmatprep.subr.mxu0 0.0
    %2474 = vmatpush1.msra.mxu0 0.0
    %2475 = vmatprep.subr.mxu0 0.0
    %2476 = vmatpush1.msra.mxu0 0.0
    %2477 = vmatprep.subr.mxu0 0.0
    %2478 = vmatpush1.msra.mxu0 0.0
    %2479 = vmatprep.subr.mxu0 0.0
    %2480 = vmatpush1.msra.mxu0 0.0
    %2481 = vmatprep.mubr.f32.mxu0 0.0
    %2482 = vmatmul.mubr.f32.gmra.mrb[0].mxu0 %v2412
    %v2483 = vpop.f32.mrb[0].mxu0
    %v2484 = vadd.f32 %v2409, %v2483
    %v2485 = vpop.f32.mrb[0].mxu0
    %2486 = vmatprep.mubr.f32.mxu0 0.0
    %2487 = vmatmul.mubr.f32.gmra.mrb[0].mxu0 %v2415
    %v2488 = vpop.f32.mrb[0].mxu0
    %v2489 = vadd.f32 %v2409, %v2488
    %v2490 = vpop.f32.mrb[0].mxu0
    %2491 = vdwg.mxu0
    %v2492 = vld [vmem:[#allocation8 + $0xe8] sm:$0x1]
    %v2493 = vld [vmem:[#allocation8 + $0xe9] sm:$0x1]
    %v2494 = vadd.f32 %v2303, %v2484
    %v2495 = vadd.f32 %v2304, %v2489
    %v2496 = vsel %vm98, %v2494, 0.0
    %2497 = vadd.xlane.f32.xlu0 %v2496
    %v2498 = vpop.xlane.xlu0 %2497
    %v2499 = vsel %vm98, %v2495, 0.0
    %2500 = vadd.xlane.f32.xlu0 %v2499
    %v2501 = vpop.xlane.xlu0 %2500
    %v2502 = vmul.f32 %v2498, %v2272
    %v2503 = vmul.f32 %v2501, %v2272
    %v2504 = vsub.f32 %v2494, %v2502
    %v2505 = vsub.f32 %v2495, %v2503
    %v2506 = vmul.f32 %v2504, %v2504
    %v2507 = vmul.f32 %v2505, %v2505
    %v2508 = vsel %vm98, %v2506, 0.0
    %2509 = vadd.xlane.f32.xlu0 %v2508
    %v2510 = vpop.xlane.xlu0 %2509
    %v2511 = vsel %vm98, %v2507, 0.0
    %2512 = vadd.xlane.f32.xlu0 %v2511
    %v2513 = vpop.xlane.xlu0 %2512
    %v2514 = vmul.f32 %v2510, %v2272
    %v2515 = vmul.f32 %v2513, %v2272
    %v2516 = vadd.f32 %v2514, 1e-05
    %v2517 = vadd.f32 %v2515, 1e-05
    %v2518 = vrsqrt.pop %v2516
    %v2519 = vrsqrt.pop %v2517
    %v2520 = vmul.f32 %v2504, %v2518
    %v2521 = vmul.f32 %v2505, %v2519
    %v2522 = vlaneseq
    %v2523 = vshrl.u32 %v2522, 7
    %v2524 = vsub.s32 0, %v2523
    %v2525 = vrot.slane %v2492, %v2524
    %v2526 = vmul.f32 %v2520, %v2525
    %v2527 = vmul.f32 %v2521, %v2525
    %v2528 = vlaneseq
    %v2529 = vshrl.u32 %v2528, 7
    %v2530 = vsub.s32 0, %v2529
    %v2531 = vrot.slane %v2493, %v2530
    %v2532 = vadd.f32 %v2526, %v2531
    %v2533 = vadd.f32 %v2527, %v2531
    %2534 = vst.msk [vmem:[#allocation10] sm:$0xff] %vm98, %v2532
    %2535 = vst.msk [vmem:[#allocation10 + $0x8] sm:$0xff] %vm98, %v2533
    // Predicated region
    $region34: #{tpu_custom_call.1} parent=1 // pred_check
      _
    $region35: #{tpu_custom_call.1} parent=1 // pred_check_branch
      %2537 = sbr.rel (0) target = $region37
    $region36: #{tpu_custom_call.1} parent=1 // pred_region
      %s2539 = ssub.s32 256, 256
      %2540 = vsyncadd [#allocation4], %s2539
      %s2541 = sshll.u32 [#allocation10], 4
      %s2542 = int_to_ptr.vmem [resolvable:$true] %s2541
      %2547 = dma.vmem_to_hbm [thread:$0]  %s2542, 256, %s4, [#allocation4], 128, 128, 8
    $region37: #{tpu_custom_call.1} parent=1 // pred_fallthru
      _
    // Predicated region
    $region38: #{tpu_custom_call.1} parent=1 // pred_check
      _
    $region39: #{tpu_custom_call.1} parent=1 // pred_check_branch
      %2549 = sbr.rel (0) target = $region41
    $region40: #{tpu_custom_call.1} parent=1 // pred_region
      %2550 = dma.done [#allocation4], 256
    $region41: #{tpu_custom_call.1} parent=1 // pred_fallthru
      _
    %2551 = vsyncpa [#allocation3], 1
    %2552 = vsyncpa [#allocation6], 1
    %2553 = vsyncpa [#allocation9], 1
    %2554 = vsyncpa [#allocation4], 1

</llo_original>
